<compile_context>
chip_gen: v7x
topology: tpu7x:2x2x1
jax: 0.10.0
libtpu: 0.0.40
codegen_flags: <defaults>
</compile_context>

<pallas_src>
import math
import numpy as np
import jax
import jax.numpy as jnp
from jax import lax
from jax.experimental import pallas as pl
from jax.experimental.pallas import tpu as pltpu

N_HEAD = 4                              # Repro.__init__ default n_head=4
HEAD_DIM = 64
D_ATTN = N_HEAD * HEAD_DIM              # 256
SM_SCALE = 1.0 / math.sqrt(HEAD_DIM)    # flex_attention default scale

# TODO(synk): the PyTorch repro passes score_brownian to flex_attention without
# binding its required T/W/H/grid_scale args (it would raise at runtime); we bind
# them here as constants such that seq_len == T * W * H and grid_scale = [1, 1, 1].
T_FRAMES, GRID_W, GRID_H = 2, 4, 4
GRID_SCALE = (1, 1, 1)
SEQ_LEN = T_FRAMES * GRID_W * GRID_H    # 32


# ---------------------------------------------------------------------------
# Brownian score bias: compile-time constant -> precompute once on the host.
# ---------------------------------------------------------------------------
def build_brownian_bias(S):
    tq = np.arange(S, dtype=np.int64)[:, None] * np.ones((1, S), dtype=np.int64)
    tk = np.arange(S, dtype=np.int64)[None, :] * np.ones((S, 1), dtype=np.int64)
    WH = GRID_W * GRID_H
    F_q = (tq // WH) * GRID_SCALE[0]
    W_q = (tq % WH // GRID_W) * GRID_SCALE[1]
    H_q = (tq % WH % GRID_W) * GRID_SCALE[2]
    F_kv = (tk // WH) * GRID_SCALE[0]
    W_kv = (tk % WH // GRID_W) * GRID_SCALE[1]
    H_kv = (tk % WH % GRID_W) * GRID_SCALE[2]

    width_factor = 0.2
    height_factor = 0.2
    num_w = ((W_q - W_kv) ** 2).astype(np.float64)
    num_h = ((H_q - H_kv) ** 2).astype(np.float64)
    time_diff = np.abs(F_q - F_kv).astype(np.float64) * 0.05
    time_diff = time_diff + (time_diff == 0).astype(np.float64) * 0.05
    coeff_time = time_diff
    # NOTE: factor swap (Height for width / Width for height) reproduced verbatim
    # from the PyTorch score_brownian.
    den_w = 2.0 * height_factor ** 2 * coeff_time
    den_h = 2.0 * width_factor ** 2 * coeff_time
    coeff_h = 1.0 / np.sqrt(2.0 * np.pi * height_factor ** 2 * coeff_time)
    coeff_w = 1.0 / np.sqrt(2.0 * np.pi * width_factor ** 2 * coeff_time)
    bias = coeff_w * np.exp(-num_w / den_w) * coeff_h * np.exp(-num_h / den_h)
    return np.asarray(bias, dtype=np.float32)


BROWNIAN_BIAS = jnp.asarray(build_brownian_bias(SEQ_LEN))   # (S, S) ~ 4 KB constant


def _on_v7x():
    try:
        kind = jax.devices()[0].device_kind.lower()
    except Exception:
        return False
    return ("v7" in kind) or ("7x" in kind)


_ON_V7X = _on_v7x()


# ---------------------------------------------------------------------------
# Fused kernel. `rows` = number of token rows handled per grid step
# (B*S on single-TC chips, S on v7x where the batch axis is CORE_PARALLEL).
# SM_SCALE is already folded into the Q columns of w/bias.
# ---------------------------------------------------------------------------
def make_fused_kernel(rows):
    nb = rows // SEQ_LEN   # batches handled in this step

    def kernel(x_ref, w_ref, b_ref, bias_ref, o_ref):
        # QKV projection: (rows, 256) @ (256, 768) on the MXU, f32 accumulate.
        qkv = jnp.dot(x_ref[...], w_ref[...],
                      preferred_element_type=jnp.float32) + b_ref[...]
        bias = bias_ref[...]                       # (S, S) constant in VMEM

        for b in range(nb):                        # static unroll
            r0 = b * SEQ_LEN
            outs = []
            for h in range(N_HEAD):                # static unroll: nb*4 heads
                lo = h * HEAD_DIM
                q = qkv[r0:r0 + SEQ_LEN, lo:lo + HEAD_DIM]                     # (S, D)
                k = qkv[r0:r0 + SEQ_LEN, D_ATTN + lo:D_ATTN + lo + HEAD_DIM]   # (S, D)
                v = qkv[r0:r0 + SEQ_LEN, 2 * D_ATTN + lo:2 * D_ATTN + lo + HEAD_DIM]

                # q @ k^T without materializing a transpose (contract last dims).
                # Scale already folded into q via the weight constant.
                s = lax.dot_general(q, k, (((1,), (1,)), ((), ())),
                                    preferred_element_type=jnp.float32)
                s = s + bias                       # score_mod (brownian bias)
                m = jnp.max(s, axis=-1, keepdims=True)
                p = jnp.exp(s - m)
                l = jnp.sum(p, axis=-1, keepdims=True)     # (S, 1)
                inv_l = pl.reciprocal(l)                   # exact (rows sum to 1)
                o = jnp.dot(p, v, preferred_element_type=jnp.float32) * inv_l
                outs.append(o)

            # Lane-dense store: one (S, H*D) = (32, 256) slab per batch element.
            o_ref[r0:r0 + SEQ_LEN, :] = jnp.concatenate(outs, axis=-1).astype(o_ref.dtype)

    return kernel


def fused_forward_call(x2, w_t, b_row, bias, batch):
    """x2: (B*S, D_ATTN) -> (B*S, H*D), lane-dense."""
    total_rows, _ = x2.shape
    S = SEQ_LEN

    if _ON_V7X and batch > 1:
        # v7x: one batch element per grid step; CORE_PARALLEL shards the two
        # steps across the chip's two TensorCores.
        # TODO(synk): could add pipeline_mode=pl.Buffered(1) on the constant
        # (weight/bias/brownian) specs to drop their redundant second buffer.
        grid = (batch,)
        rows = S
        dims = (pltpu.CORE_PARALLEL,)
    else:
        # Single-TC chips (v5e/v6e): one grid step -> one (B*S,256)@(256,768)
        # matmul and the fixed per-step overhead is paid once.
        grid = (1,)
        rows = total_rows
        dims = (pltpu.ARBITRARY,)

    flops = (2 * total_rows * D_ATTN * 3 * D_ATTN
             + batch * N_HEAD * (4 * S * S * HEAD_DIM))
    transcendentals = batch * N_HEAD * S * S
    bytes_accessed = 4 * (x2.size + w_t.size + b_row.size + bias.size
                          + total_rows * D_ATTN)

    return pl.pallas_call(
        make_fused_kernel(rows),
        out_shape=jax.ShapeDtypeStruct((total_rows, D_ATTN), jnp.float32),
        grid=grid,
        in_specs=[
            pl.BlockSpec((rows, D_ATTN), lambda b: (b, 0)),           # x rows
            pl.BlockSpec((D_ATTN, 3 * D_ATTN), lambda b: (0, 0)),     # W^T (resident)
            pl.BlockSpec((1, 3 * D_ATTN), lambda b: (0, 0)),          # bias row
            pl.BlockSpec((S, S), lambda b: (0, 0)),                   # brownian bias
        ],
        out_specs=pl.BlockSpec((rows, D_ATTN), lambda b: (b, 0)),     # lane-dense
        compiler_params=pltpu.CompilerParams(dimension_semantics=dims),
        cost_estimate=pl.CostEstimate(flops=flops,
                                      transcendentals=transcendentals,
                                      bytes_accessed=bytes_accessed),
    )(x2, w_t, b_row, bias)


@jax.jit
def repro_forward(x, w_t_scaled, b_row_scaled, bias):
    """x: (B, S, D_ATTN) -> (B, N_HEAD, S, HEAD_DIM), matching the PyTorch module."""
    B, S, _ = x.shape
    x2 = x.reshape(B * S, D_ATTN)                         # free contiguous merge
    out2 = fused_forward_call(x2, w_t_scaled, b_row_scaled, bias, B)  # (B*S, H*D)
    # TODO(synk): this trailing reshape+transpose only exists to match
    # flex_attention's (B, H, S, D) output layout; drop/fuse it if the consumer
    # accepts (B, S, H*D).
    return out2.reshape(B, S, N_HEAD, HEAD_DIM).transpose(0, 2, 1, 3)


def fold_scale(w_t, b_vec):
    """Fold SM_SCALE into the Q columns of the pre-transposed weight & bias."""
    col_scale = jnp.concatenate([
        jnp.full((D_ATTN,), SM_SCALE, dtype=jnp.float32),
        jnp.ones((2 * D_ATTN,), dtype=jnp.float32)])
    return w_t * col_scale[None, :], (b_vec * col_scale)[None, :]


# ---------------------------------------------------------------------------
# Pure-JAX reference for validation (unscaled params, explicit SM_SCALE).
# ---------------------------------------------------------------------------
def repro_forward_ref(x, w_t, b_vec, bias):
    B, S, _ = x.shape
    qkv = x.reshape(B * S, D_ATTN) @ w_t + b_vec[None, :]
    qkv = qkv.reshape(B, S, 3 * D_ATTN)
    q, k, v = jnp.split(qkv, 3, axis=2)

    def to_bhsd(t):
        return t.reshape(B, S, N_HEAD, HEAD_DIM).transpose(0, 2, 1, 3)

    q, k, v = to_bhsd(q), to_bhsd(k), to_bhsd(v)
    s = jnp.einsum("bhqd,bhkd->bhqk", q, k) * SM_SCALE
    s = s + bias[None, None]
    p = jax.nn.softmax(s, axis=-1)
    return jnp.einsum("bhqk,bhkd->bhqd", p, v)


if __name__ == "__main__":
    key = jax.random.PRNGKey(0)
    B = 2
    S = SEQ_LEN  # 32
    x = jax.random.normal(key, (B, S, D_ATTN), dtype=jnp.float32)

    # Module parameters (PyTorch: weight.fill_(0.1), bias.fill_(0.1)).
    # Weight stored pre-transposed as (in, 3*out); SM_SCALE folded on the host.
    w_t = jnp.full((D_ATTN, 3 * D_ATTN), 0.1, dtype=jnp.float32)
    b_vec = jnp.full((3 * D_ATTN,), 0.1, dtype=jnp.float32)
    w_t_k, b_row_k = fold_scale(w_t, b_vec)

    out = jax.block_until_ready(repro_forward(x, w_t_k, b_row_k, BROWNIAN_BIAS))
    assert out.shape == (B, N_HEAD, S, HEAD_DIM)
    ref = repro_forward_ref(x, w_t, b_vec, BROWNIAN_BIAS)
    assert jnp.allclose(out, ref, rtol=2e-3, atol=2e-3), "mismatch vs reference (module params)"

    # Extra correctness pass with non-degenerate random params: the 0.1-filled
    # module weights make every qkv column identical, which would hide any
    # head-slicing bug. Same compiled kernel, different values.
    kw, kb = jax.random.split(jax.random.PRNGKey(1))
    w_rand = jax.random.normal(kw, (D_ATTN, 3 * D_ATTN), dtype=jnp.float32) * 0.05
    b_rand = jax.random.normal(kb, (3 * D_ATTN,), dtype=jnp.float32) * 0.05
    w_rand_k, b_rand_k = fold_scale(w_rand, b_rand)
    out2 = jax.block_until_ready(repro_forward(x, w_rand_k, b_rand_k, BROWNIAN_BIAS))
    ref2 = repro_forward_ref(x, w_rand, b_rand, BROWNIAN_BIAS)
    assert jnp.allclose(out2, ref2, rtol=2e-3, atol=2e-3), "mismatch vs reference (random params)"

    print("KERNEL_OK")
</pallas_src>

<mosaic_0001>
module attributes {stable_mosaic.version = 11 : i64} {
  func.func @kernel(%arg0: i32, %arg1: memref<64x256xf32, #tpu.memory_space<vmem>>, %arg2: memref<256x768xf32, #tpu.memory_space<vmem>>, %arg3: memref<1x768xf32, #tpu.memory_space<vmem>>, %arg4: memref<32x32xf32, #tpu.memory_space<vmem>>, %arg5: memref<64x256xf32, #tpu.memory_space<vmem>>) attributes {dimension_semantics = [#tpu.dimension_semantics<arbitrary>], iteration_bounds = array<i64: 1>, scalar_prefetch = 0 : i64, scratch_operands = 0 : i64, tpu.core_type = #tpu.core_type<tc>, window_params = [{transform_indices = @transform_0, window_bounds = array<i64: 64, 256>}, {pipeline_mode = #tpu.pipeline_mode<synchronous>, transform_indices = @transform_1, window_bounds = array<i64: 256, 768>}, {pipeline_mode = #tpu.pipeline_mode<synchronous>, transform_indices = @transform_2, window_bounds = array<i64: 1, 768>}, {pipeline_mode = #tpu.pipeline_mode<synchronous>, transform_indices = @transform_3, window_bounds = array<i64: 32, 32>}, {transform_indices = @transform_4, window_bounds = array<i64: 64, 256>}]} {
    %c0 = arith.constant 0 : index
    %c0_0 = arith.constant 0 : index
    %0 = vector.load %arg1[%c0, %c0_0] : memref<64x256xf32, #tpu.memory_space<vmem>>, vector<64x256xf32>
    %c0_1 = arith.constant 0 : index
    %c0_2 = arith.constant 0 : index
    %1 = vector.load %arg2[%c0_1, %c0_2] : memref<256x768xf32, #tpu.memory_space<vmem>>, vector<256x768xf32>
    %cst = arith.constant dense<0.000000e+00> : vector<64x768xf32>
    %2 = tpu.matmul %0, %1, %cst {dimension_numbers = #tpu.dot_dimension_numbers<[1], [0], [0], [1], [0, 0, 1, 1], [], []>} : vector<64x256xf32>, vector<256x768xf32>, vector<64x768xf32> -> vector<64x768xf32>
    %c0_3 = arith.constant 0 : index
    %c0_4 = arith.constant 0 : index
    %3 = vector.load %arg3[%c0_3, %c0_4] : memref<1x768xf32, #tpu.memory_space<vmem>>, vector<1x768xf32>
    %4 = vector.broadcast %3 : vector<1x768xf32> to vector<64x768xf32>
    %5 = arith.addf %2, %4 : vector<64x768xf32>
    %c0_5 = arith.constant 0 : index
    %c0_6 = arith.constant 0 : index
    %6 = vector.load %arg4[%c0_5, %c0_6] : memref<32x32xf32, #tpu.memory_space<vmem>>, vector<32x32xf32>
    %7 = vector.extract_strided_slice %5 {offsets = [0, 0], sizes = [32, 64], strides = [1, 1]} : vector<64x768xf32> to vector<32x64xf32>
    %8 = vector.extract_strided_slice %5 {offsets = [0, 256], sizes = [32, 64], strides = [1, 1]} : vector<64x768xf32> to vector<32x64xf32>
    %9 = vector.extract_strided_slice %5 {offsets = [0, 512], sizes = [32, 64], strides = [1, 1]} : vector<64x768xf32> to vector<32x64xf32>
    %cst_7 = arith.constant dense<0.000000e+00> : vector<32x32xf32>
    %10 = tpu.matmul %7, %8, %cst_7 {dimension_numbers = #tpu.dot_dimension_numbers<[1], [1], [0], [0], [0, 0, 1, 0], [], []>} : vector<32x64xf32>, vector<32x64xf32>, vector<32x32xf32> -> vector<32x32xf32>
    %11 = arith.addf %10, %6 : vector<32x32xf32>
    %cst_8 = arith.constant dense<0xFF800000> : vector<32xf32>
    %12 = vector.multi_reduction <maximumf>, %11, %cst_8 [1] : vector<32x32xf32> to vector<32xf32>
    %13 = vector.shape_cast %12 : vector<32xf32> to vector<32x1xf32>
    %14 = vector.broadcast %13 : vector<32x1xf32> to vector<32x32xf32>
    %15 = arith.subf %11, %14 : vector<32x32xf32>
    %16 = math.exp %15 : vector<32x32xf32>
    %cst_9 = arith.constant dense<0.000000e+00> : vector<32xf32>
    %17 = vector.multi_reduction <add>, %16, %cst_9 [1] : vector<32x32xf32> to vector<32xf32>
    %18 = vector.shape_cast %17 : vector<32xf32> to vector<32x1xf32>
    %19 = tpu.reciprocal %18 : vector<32x1xf32> -> vector<32x1xf32>
    %cst_10 = arith.constant dense<0.000000e+00> : vector<32x64xf32>
    %20 = tpu.matmul %16, %9, %cst_10 {dimension_numbers = #tpu.dot_dimension_numbers<[1], [0], [0], [1], [0, 0, 1, 1], [], []>} : vector<32x32xf32>, vector<32x64xf32>, vector<32x64xf32> -> vector<32x64xf32>
    %21 = vector.broadcast %19 : vector<32x1xf32> to vector<32x64xf32>
    %22 = arith.mulf %20, %21 : vector<32x64xf32>
    %23 = vector.extract_strided_slice %5 {offsets = [0, 64], sizes = [32, 64], strides = [1, 1]} : vector<64x768xf32> to vector<32x64xf32>
    %24 = vector.extract_strided_slice %5 {offsets = [0, 320], sizes = [32, 64], strides = [1, 1]} : vector<64x768xf32> to vector<32x64xf32>
    %25 = vector.extract_strided_slice %5 {offsets = [0, 576], sizes = [32, 64], strides = [1, 1]} : vector<64x768xf32> to vector<32x64xf32>
    %cst_11 = arith.constant dense<0.000000e+00> : vector<32x32xf32>
    %26 = tpu.matmul %23, %24, %cst_11 {dimension_numbers = #tpu.dot_dimension_numbers<[1], [1], [0], [0], [0, 0, 1, 0], [], []>} : vector<32x64xf32>, vector<32x64xf32>, vector<32x32xf32> -> vector<32x32xf32>
    %27 = arith.addf %26, %6 : vector<32x32xf32>
    %cst_12 = arith.constant dense<0xFF800000> : vector<32xf32>
    %28 = vector.multi_reduction <maximumf>, %27, %cst_12 [1] : vector<32x32xf32> to vector<32xf32>
    %29 = vector.shape_cast %28 : vector<32xf32> to vector<32x1xf32>
    %30 = vector.broadcast %29 : vector<32x1xf32> to vector<32x32xf32>
    %31 = arith.subf %27, %30 : vector<32x32xf32>
    %32 = math.exp %31 : vector<32x32xf32>
    %cst_13 = arith.constant dense<0.000000e+00> : vector<32xf32>
    %33 = vector.multi_reduction <add>, %32, %cst_13 [1] : vector<32x32xf32> to vector<32xf32>
    %34 = vector.shape_cast %33 : vector<32xf32> to vector<32x1xf32>
    %35 = tpu.reciprocal %34 : vector<32x1xf32> -> vector<32x1xf32>
    %cst_14 = arith.constant dense<0.000000e+00> : vector<32x64xf32>
    %36 = tpu.matmul %32, %25, %cst_14 {dimension_numbers = #tpu.dot_dimension_numbers<[1], [0], [0], [1], [0, 0, 1, 1], [], []>} : vector<32x32xf32>, vector<32x64xf32>, vector<32x64xf32> -> vector<32x64xf32>
    %37 = vector.broadcast %35 : vector<32x1xf32> to vector<32x64xf32>
    %38 = arith.mulf %36, %37 : vector<32x64xf32>
    %39 = vector.extract_strided_slice %5 {offsets = [0, 128], sizes = [32, 64], strides = [1, 1]} : vector<64x768xf32> to vector<32x64xf32>
    %40 = vector.extract_strided_slice %5 {offsets = [0, 384], sizes = [32, 64], strides = [1, 1]} : vector<64x768xf32> to vector<32x64xf32>
    %41 = vector.extract_strided_slice %5 {offsets = [0, 640], sizes = [32, 64], strides = [1, 1]} : vector<64x768xf32> to vector<32x64xf32>
    %cst_15 = arith.constant dense<0.000000e+00> : vector<32x32xf32>
    %42 = tpu.matmul %39, %40, %cst_15 {dimension_numbers = #tpu.dot_dimension_numbers<[1], [1], [0], [0], [0, 0, 1, 0], [], []>} : vector<32x64xf32>, vector<32x64xf32>, vector<32x32xf32> -> vector<32x32xf32>
    %43 = arith.addf %42, %6 : vector<32x32xf32>
    %cst_16 = arith.constant dense<0xFF800000> : vector<32xf32>
    %44 = vector.multi_reduction <maximumf>, %43, %cst_16 [1] : vector<32x32xf32> to vector<32xf32>
    %45 = vector.shape_cast %44 : vector<32xf32> to vector<32x1xf32>
    %46 = vector.broadcast %45 : vector<32x1xf32> to vector<32x32xf32>
    %47 = arith.subf %43, %46 : vector<32x32xf32>
    %48 = math.exp %47 : vector<32x32xf32>
    %cst_17 = arith.constant dense<0.000000e+00> : vector<32xf32>
    %49 = vector.multi_reduction <add>, %48, %cst_17 [1] : vector<32x32xf32> to vector<32xf32>
    %50 = vector.shape_cast %49 : vector<32xf32> to vector<32x1xf32>
    %51 = tpu.reciprocal %50 : vector<32x1xf32> -> vector<32x1xf32>
    %cst_18 = arith.constant dense<0.000000e+00> : vector<32x64xf32>
    %52 = tpu.matmul %48, %41, %cst_18 {dimension_numbers = #tpu.dot_dimension_numbers<[1], [0], [0], [1], [0, 0, 1, 1], [], []>} : vector<32x32xf32>, vector<32x64xf32>, vector<32x64xf32> -> vector<32x64xf32>
    %53 = vector.broadcast %51 : vector<32x1xf32> to vector<32x64xf32>
    %54 = arith.mulf %52, %53 : vector<32x64xf32>
    %55 = vector.extract_strided_slice %5 {offsets = [0, 192], sizes = [32, 64], strides = [1, 1]} : vector<64x768xf32> to vector<32x64xf32>
    %56 = vector.extract_strided_slice %5 {offsets = [0, 448], sizes = [32, 64], strides = [1, 1]} : vector<64x768xf32> to vector<32x64xf32>
    %57 = vector.extract_strided_slice %5 {offsets = [0, 704], sizes = [32, 64], strides = [1, 1]} : vector<64x768xf32> to vector<32x64xf32>
    %cst_19 = arith.constant dense<0.000000e+00> : vector<32x32xf32>
    %58 = tpu.matmul %55, %56, %cst_19 {dimension_numbers = #tpu.dot_dimension_numbers<[1], [1], [0], [0], [0, 0, 1, 0], [], []>} : vector<32x64xf32>, vector<32x64xf32>, vector<32x32xf32> -> vector<32x32xf32>
    %59 = arith.addf %58, %6 : vector<32x32xf32>
    %cst_20 = arith.constant dense<0xFF800000> : vector<32xf32>
    %60 = vector.multi_reduction <maximumf>, %59, %cst_20 [1] : vector<32x32xf32> to vector<32xf32>
    %61 = vector.shape_cast %60 : vector<32xf32> to vector<32x1xf32>
    %62 = vector.broadcast %61 : vector<32x1xf32> to vector<32x32xf32>
    %63 = arith.subf %59, %62 : vector<32x32xf32>
    %64 = math.exp %63 : vector<32x32xf32>
    %cst_21 = arith.constant dense<0.000000e+00> : vector<32xf32>
    %65 = vector.multi_reduction <add>, %64, %cst_21 [1] : vector<32x32xf32> to vector<32xf32>
    %66 = vector.shape_cast %65 : vector<32xf32> to vector<32x1xf32>
    %67 = tpu.reciprocal %66 : vector<32x1xf32> -> vector<32x1xf32>
    %cst_22 = arith.constant dense<0.000000e+00> : vector<32x64xf32>
    %68 = tpu.matmul %64, %57, %cst_22 {dimension_numbers = #tpu.dot_dimension_numbers<[1], [0], [0], [1], [0, 0, 1, 1], [], []>} : vector<32x32xf32>, vector<32x64xf32>, vector<32x64xf32> -> vector<32x64xf32>
    %69 = vector.broadcast %67 : vector<32x1xf32> to vector<32x64xf32>
    %70 = arith.mulf %68, %69 : vector<32x64xf32>
    %71 = tpu.concatenate %22, %38, %54, %70 in 1 : vector<32x64xf32>, vector<32x64xf32>, vector<32x64xf32>, vector<32x64xf32> -> vector<32x256xf32>
    %c0_23 = arith.constant 0 : index
    %c0_24 = arith.constant 0 : index
    %72 = vector.load %arg5[%c0_23, %c0_24] : memref<64x256xf32, #tpu.memory_space<vmem>>, vector<32x256xf32>
    tpu.vector_store %arg5[%c0_23, %c0_24], %71 {strides = array<i32>} : memref<64x256xf32, #tpu.memory_space<vmem>>, vector<32x256xf32>,
    %73 = vector.extract_strided_slice %5 {offsets = [32, 0], sizes = [32, 64], strides = [1, 1]} : vector<64x768xf32> to vector<32x64xf32>
    %74 = vector.extract_strided_slice %5 {offsets = [32, 256], sizes = [32, 64], strides = [1, 1]} : vector<64x768xf32> to vector<32x64xf32>
    %75 = vector.extract_strided_slice %5 {offsets = [32, 512], sizes = [32, 64], strides = [1, 1]} : vector<64x768xf32> to vector<32x64xf32>
    %cst_25 = arith.constant dense<0.000000e+00> : vector<32x32xf32>
    %76 = tpu.matmul %73, %74, %cst_25 {dimension_numbers = #tpu.dot_dimension_numbers<[1], [1], [0], [0], [0, 0, 1, 0], [], []>} : vector<32x64xf32>, vector<32x64xf32>, vector<32x32xf32> -> vector<32x32xf32>
    %77 = arith.addf %76, %6 : vector<32x32xf32>
    %cst_26 = arith.constant dense<0xFF800000> : vector<32xf32>
    %78 = vector.multi_reduction <maximumf>, %77, %cst_26 [1] : vector<32x32xf32> to vector<32xf32>
    %79 = vector.shape_cast %78 : vector<32xf32> to vector<32x1xf32>
    %80 = vector.broadcast %79 : vector<32x1xf32> to vector<32x32xf32>
    %81 = arith.subf %77, %80 : vector<32x32xf32>
    %82 = math.exp %81 : vector<32x32xf32>
    %cst_27 = arith.constant dense<0.000000e+00> : vector<32xf32>
    %83 = vector.multi_reduction <add>, %82, %cst_27 [1] : vector<32x32xf32> to vector<32xf32>
    %84 = vector.shape_cast %83 : vector<32xf32> to vector<32x1xf32>
    %85 = tpu.reciprocal %84 : vector<32x1xf32> -> vector<32x1xf32>
    %cst_28 = arith.constant dense<0.000000e+00> : vector<32x64xf32>
    %86 = tpu.matmul %82, %75, %cst_28 {dimension_numbers = #tpu.dot_dimension_numbers<[1], [0], [0], [1], [0, 0, 1, 1], [], []>} : vector<32x32xf32>, vector<32x64xf32>, vector<32x64xf32> -> vector<32x64xf32>
    %87 = vector.broadcast %85 : vector<32x1xf32> to vector<32x64xf32>
    %88 = arith.mulf %86, %87 : vector<32x64xf32>
    %89 = vector.extract_strided_slice %5 {offsets = [32, 64], sizes = [32, 64], strides = [1, 1]} : vector<64x768xf32> to vector<32x64xf32>
    %90 = vector.extract_strided_slice %5 {offsets = [32, 320], sizes = [32, 64], strides = [1, 1]} : vector<64x768xf32> to vector<32x64xf32>
    %91 = vector.extract_strided_slice %5 {offsets = [32, 576], sizes = [32, 64], strides = [1, 1]} : vector<64x768xf32> to vector<32x64xf32>
    %cst_29 = arith.constant dense<0.000000e+00> : vector<32x32xf32>
    %92 = tpu.matmul %89, %90, %cst_29 {dimension_numbers = #tpu.dot_dimension_numbers<[1], [1], [0], [0], [0, 0, 1, 0], [], []>} : vector<32x64xf32>, vector<32x64xf32>, vector<32x32xf32> -> vector<32x32xf32>
    %93 = arith.addf %92, %6 : vector<32x32xf32>
    %cst_30 = arith.constant dense<0xFF800000> : vector<32xf32>
    %94 = vector.multi_reduction <maximumf>, %93, %cst_30 [1] : vector<32x32xf32> to vector<32xf32>
    %95 = vector.shape_cast %94 : vector<32xf32> to vector<32x1xf32>
    %96 = vector.broadcast %95 : vector<32x1xf32> to vector<32x32xf32>
    %97 = arith.subf %93, %96 : vector<32x32xf32>
    %98 = math.exp %97 : vector<32x32xf32>
    %cst_31 = arith.constant dense<0.000000e+00> : vector<32xf32>
    %99 = vector.multi_reduction <add>, %98, %cst_31 [1] : vector<32x32xf32> to vector<32xf32>
    %100 = vector.shape_cast %99 : vector<32xf32> to vector<32x1xf32>
    %101 = tpu.reciprocal %100 : vector<32x1xf32> -> vector<32x1xf32>
    %cst_32 = arith.constant dense<0.000000e+00> : vector<32x64xf32>
    %102 = tpu.matmul %98, %91, %cst_32 {dimension_numbers = #tpu.dot_dimension_numbers<[1], [0], [0], [1], [0, 0, 1, 1], [], []>} : vector<32x32xf32>, vector<32x64xf32>, vector<32x64xf32> -> vector<32x64xf32>
    %103 = vector.broadcast %101 : vector<32x1xf32> to vector<32x64xf32>
    %104 = arith.mulf %102, %103 : vector<32x64xf32>
    %105 = vector.extract_strided_slice %5 {offsets = [32, 128], sizes = [32, 64], strides = [1, 1]} : vector<64x768xf32> to vector<32x64xf32>
    %106 = vector.extract_strided_slice %5 {offsets = [32, 384], sizes = [32, 64], strides = [1, 1]} : vector<64x768xf32> to vector<32x64xf32>
    %107 = vector.extract_strided_slice %5 {offsets = [32, 640], sizes = [32, 64], strides = [1, 1]} : vector<64x768xf32> to vector<32x64xf32>
    %cst_33 = arith.constant dense<0.000000e+00> : vector<32x32xf32>
    %108 = tpu.matmul %105, %106, %cst_33 {dimension_numbers = #tpu.dot_dimension_numbers<[1], [1], [0], [0], [0, 0, 1, 0], [], []>} : vector<32x64xf32>, vector<32x64xf32>, vector<32x32xf32> -> vector<32x32xf32>
    %109 = arith.addf %108, %6 : vector<32x32xf32>
    %cst_34 = arith.constant dense<0xFF800000> : vector<32xf32>
    %110 = vector.multi_reduction <maximumf>, %109, %cst_34 [1] : vector<32x32xf32> to vector<32xf32>
    %111 = vector.shape_cast %110 : vector<32xf32> to vector<32x1xf32>
    %112 = vector.broadcast %111 : vector<32x1xf32> to vector<32x32xf32>
    %113 = arith.subf %109, %112 : vector<32x32xf32>
    %114 = math.exp %113 : vector<32x32xf32>
    %cst_35 = arith.constant dense<0.000000e+00> : vector<32xf32>
    %115 = vector.multi_reduction <add>, %114, %cst_35 [1] : vector<32x32xf32> to vector<32xf32>
    %116 = vector.shape_cast %115 : vector<32xf32> to vector<32x1xf32>
    %117 = tpu.reciprocal %116 : vector<32x1xf32> -> vector<32x1xf32>
    %cst_36 = arith.constant dense<0.000000e+00> : vector<32x64xf32>
    %118 = tpu.matmul %114, %107, %cst_36 {dimension_numbers = #tpu.dot_dimension_numbers<[1], [0], [0], [1], [0, 0, 1, 1], [], []>} : vector<32x32xf32>, vector<32x64xf32>, vector<32x64xf32> -> vector<32x64xf32>
    %119 = vector.broadcast %117 : vector<32x1xf32> to vector<32x64xf32>
    %120 = arith.mulf %118, %119 : vector<32x64xf32>
    %121 = vector.extract_strided_slice %5 {offsets = [32, 192], sizes = [32, 64], strides = [1, 1]} : vector<64x768xf32> to vector<32x64xf32>
    %122 = vector.extract_strided_slice %5 {offsets = [32, 448], sizes = [32, 64], strides = [1, 1]} : vector<64x768xf32> to vector<32x64xf32>
    %123 = vector.extract_strided_slice %5 {offsets = [32, 704], sizes = [32, 64], strides = [1, 1]} : vector<64x768xf32> to vector<32x64xf32>
    %cst_37 = arith.constant dense<0.000000e+00> : vector<32x32xf32>
    %124 = tpu.matmul %121, %122, %cst_37 {dimension_numbers = #tpu.dot_dimension_numbers<[1], [1], [0], [0], [0, 0, 1, 0], [], []>} : vector<32x64xf32>, vector<32x64xf32>, vector<32x32xf32> -> vector<32x32xf32>
    %125 = arith.addf %124, %6 : vector<32x32xf32>
    %cst_38 = arith.constant dense<0xFF800000> : vector<32xf32>
    %126 = vector.multi_reduction <maximumf>, %125, %cst_38 [1] : vector<32x32xf32> to vector<32xf32>
    %127 = vector.shape_cast %126 : vector<32xf32> to vector<32x1xf32>
    %128 = vector.broadcast %127 : vector<32x1xf32> to vector<32x32xf32>
    %129 = arith.subf %125, %128 : vector<32x32xf32>
    %130 = math.exp %129 : vector<32x32xf32>
    %cst_39 = arith.constant dense<0.000000e+00> : vector<32xf32>
    %131 = vector.multi_reduction <add>, %130, %cst_39 [1] : vector<32x32xf32> to vector<32xf32>
    %132 = vector.shape_cast %131 : vector<32xf32> to vector<32x1xf32>
    %133 = tpu.reciprocal %132 : vector<32x1xf32> -> vector<32x1xf32>
    %cst_40 = arith.constant dense<0.000000e+00> : vector<32x64xf32>
    %134 = tpu.matmul %130, %123, %cst_40 {dimension_numbers = #tpu.dot_dimension_numbers<[1], [0], [0], [1], [0, 0, 1, 1], [], []>} : vector<32x32xf32>, vector<32x64xf32>, vector<32x64xf32> -> vector<32x64xf32>
    %135 = vector.broadcast %133 : vector<32x1xf32> to vector<32x64xf32>
    %136 = arith.mulf %134, %135 : vector<32x64xf32>
    %137 = tpu.concatenate %88, %104, %120, %136 in 1 : vector<32x64xf32>, vector<32x64xf32>, vector<32x64xf32>, vector<32x64xf32> -> vector<32x256xf32>
    %c32 = arith.constant 32 : index
    %c0_41 = arith.constant 0 : index
    %138 = vector.load %arg5[%c32, %c0_41] : memref<64x256xf32, #tpu.memory_space<vmem>>, vector<32x256xf32>
    tpu.vector_store %arg5[%c32, %c0_41], %137 {strides = array<i32>} : memref<64x256xf32, #tpu.memory_space<vmem>>, vector<32x256xf32>,
    return
  }
  func.func @transform_0(%arg0: i32) -> (i32, i32) {
    %c0_i32 = arith.constant 0 : i32
    %c0_i32_0 = arith.constant 0 : i32
    return %arg0, %c0_i32 : i32, i32
  }
  func.func @transform_1(%arg0: i32) -> (i32, i32) {
    %c0_i32 = arith.constant 0 : i32
    %c0_i32_0 = arith.constant 0 : i32
    %c0_i32_1 = arith.constant 0 : i32
    return %c0_i32, %c0_i32_0 : i32, i32
  }
  func.func @transform_2(%arg0: i32) -> (i32, i32) {
    %c0_i32 = arith.constant 0 : i32
    %c0_i32_0 = arith.constant 0 : i32
    %c0_i32_1 = arith.constant 0 : i32
    return %c0_i32, %c0_i32_0 : i32, i32
  }
  func.func @transform_3(%arg0: i32) -> (i32, i32) {
    %c0_i32 = arith.constant 0 : i32
    %c0_i32_0 = arith.constant 0 : i32
    %c0_i32_1 = arith.constant 0 : i32
    return %c0_i32, %c0_i32_0 : i32, i32
  }
  func.func @transform_4(%arg0: i32) -> (i32, i32) {
    %c0_i32 = arith.constant 0 : i32
    %c0_i32_0 = arith.constant 0 : i32
    return %arg0, %c0_i32 : i32, i32
  }
}

</mosaic_0001>

<llo_original>
// kernel: repro_forward.1
$region0: #{repro_forward.1}
  #allocation0 [shape = 'u32[]', space=smem, size = 0x4, offset = 0x4, fixed_abs, tag = 'smem constant byte address 0x4 - core index']
  #allocation1 [shape = 'u32[144,128]{1,0:T(1,128)}', space=vmem, size = 0x12000, scoped, tag = 'internal scratch']
  %s0 = inlined_call_operand.hbm [shape: f32[64,256], index: 0, kind: input, shape index: {}]
  %s1 = inlined_call_operand.hbm [shape: f32[256,768], index: 1, kind: input, shape index: {}]
  %s2 = inlined_call_operand.vmem [shape: f32[1,768], index: 2, kind: input, shape index: {}]
  %s3 = inlined_call_operand.hbm [shape: f32[32,32], index: 3, kind: input, shape index: {}]
  %s4 = inlined_call_operand.vmem [shape: f32[64,256], index: 4, kind: output, shape index: {}]
  %s5 = sld [smem:[#allocation0]]
  $region38: #{repro_forward.1} parent=0
    _
  %s7 = ssub.s32 1, %s5
  %s8 = scalar_select 0, %s7, %s5
  $region1: #{repro_forward.1} parent=0
    #allocation2 [shape = 'u8[65536]{0}', space=vmem, size = 0x10000, scoped, tag = 'input window, operand 0, single buffered']
    #allocation3 [shape = 's32[1]{0}', space=sflag, size = 0x4, scoped, tag = 'scoped memory for repro_forward.1']
    #allocation4 [shape = 'u8[786432]{0}', space=vmem, size = 0xc0000, scoped, tag = 'input window, operand 1, single buffered']
    #allocation5 [shape = 's32[1]{0}', space=sflag, size = 0x4, scoped, tag = 'scoped memory for repro_forward.1']
    #allocation6 [shape = 'u8[16384]{0}', space=vmem, size = 0x4000, scoped, tag = 'input window, operand 3, single buffered']
    %9 = vsyncpa [#allocation3], 0
    %10 = vsyncpa [#allocation5], 0
    // Predicated region
    $region2: #{repro_forward.1} parent=1 // pred_check
      _
    $region3: #{repro_forward.1} parent=1 // pred_check_branch
      %12 = sbr.rel (0) target = $region5
    $region4: #{repro_forward.1} parent=1 // pred_region
      %s14 = ssub.s32 2048, 2048
      %15 = vsyncadd [#allocation3], %s14
      %s16 = sshll.u32 [#allocation2], 4
      %s17 = int_to_ptr.vmem [resolvable:$true] %s16
      %22 = dma.hbm_to_vmem [thread:$0]  %s0, 2048, %s17, [#allocation3], 256, 256, 16
    $region5: #{repro_forward.1} parent=1 // pred_fallthru
      _
    // Predicated region
    $region6: #{repro_forward.1} parent=1 // pred_check
      _
    $region7: #{repro_forward.1} parent=1 // pred_check_branch
      %24 = sbr.rel (0) target = $region9
    $region8: #{repro_forward.1} parent=1 // pred_region
      %s26 = ssub.s32 24576, 24576
      %27 = vsyncadd [#allocation5], %s26
      %s28 = sshll.u32 [#allocation4], 4
      %s29 = int_to_ptr.vmem [resolvable:$true] %s28
      %34 = dma.hbm_to_vmem [thread:$0]  %s1, 24576, %s29, [#allocation5], 768, 768, 48
    $region9: #{repro_forward.1} parent=1 // pred_fallthru
      _
    // Predicated region
    $region10: #{repro_forward.1} parent=1 // pred_check
      _
    $region11: #{repro_forward.1} parent=1 // pred_check_branch
      %36 = sbr.rel (0) target = $region13
    $region12: #{repro_forward.1} parent=1 // pred_region
      _
    $region13: #{repro_forward.1} parent=1 // pred_fallthru
      _
    // Predicated region
    $region14: #{repro_forward.1} parent=1 // pred_check
      _
    $region15: #{repro_forward.1} parent=1 // pred_check_branch
      %38 = sbr.rel (0) target = $region17
    $region16: #{repro_forward.1} parent=1 // pred_region
      %s40 = ssub.s32 512, 512
      %41 = vsyncadd [#allocation5], %s40
      %s42 = sshll.u32 [#allocation6], 4
      %s43 = int_to_ptr.vmem [resolvable:$true] %s42
      %48 = dma.hbm_to_vmem [thread:$0]  %s3, 512, %s43, [#allocation5], 128, 128, 8
    $region17: #{repro_forward.1} parent=1 // pred_fallthru
      _
    // Predicated region
    $region18: #{repro_forward.1} parent=1 // pred_check
      _
    $region19: #{repro_forward.1} parent=1 // pred_check_branch
      %50 = sbr.rel (0) target = $region21
    $region20: #{repro_forward.1} parent=1 // pred_region
      %51 = dma.done [#allocation3], 2048
    $region21: #{repro_forward.1} parent=1 // pred_fallthru
      _
    // Predicated region
    $region22: #{repro_forward.1} parent=1 // pred_check
      _
    $region23: #{repro_forward.1} parent=1 // pred_check_branch
      %53 = sbr.rel (0) target = $region25
    $region24: #{repro_forward.1} parent=1 // pred_region
      %54 = dma.done [#allocation5], 24576
    $region25: #{repro_forward.1} parent=1 // pred_fallthru
      _
    // Predicated region
    $region26: #{repro_forward.1} parent=1 // pred_check
      _
    $region27: #{repro_forward.1} parent=1 // pred_check_branch
      %56 = sbr.rel (0) target = $region29
    $region28: #{repro_forward.1} parent=1 // pred_region
      %57 = dma.done [#allocation5], 512
    $region29: #{repro_forward.1} parent=1 // pred_fallthru
      _
    %v58 = vld [vmem:[#allocation2] sm:$0xff]
    %v59 = vld [vmem:[#allocation2 + $0x8] sm:$0xff]
    %v60 = vld [vmem:[#allocation2 + $0x10] sm:$0xff]
    %v61 = vld [vmem:[#allocation2 + $0x18] sm:$0xff]
    %v62 = vld [vmem:[#allocation2 + $0x20] sm:$0xff]
    %v63 = vld [vmem:[#allocation2 + $0x28] sm:$0xff]
    %v64 = vld [vmem:[#allocation2 + $0x30] sm:$0xff]
    %v65 = vld [vmem:[#allocation2 + $0x38] sm:$0xff]
    %v66 = vld [vmem:[#allocation2 + $0x40] sm:$0xff]
    %v67 = vld [vmem:[#allocation2 + $0x48] sm:$0xff]
    %v68 = vld [vmem:[#allocation2 + $0x50] sm:$0xff]
    %v69 = vld [vmem:[#allocation2 + $0x58] sm:$0xff]
    %v70 = vld [vmem:[#allocation2 + $0x60] sm:$0xff]
    %v71 = vld [vmem:[#allocation2 + $0x68] sm:$0xff]
    %v72 = vld [vmem:[#allocation2 + $0x70] sm:$0xff]
    %v73 = vld [vmem:[#allocation2 + $0x78] sm:$0xff]
    %v74 = vld [vmem:[#allocation4] sm:$0xff]
    %v75 = vld [vmem:[#allocation4 + $0x8] sm:$0xff]
    %v76 = vld [vmem:[#allocation4 + $0x10] sm:$0xff]
    %v77 = vld [vmem:[#allocation4 + $0x18] sm:$0xff]
    %v78 = vld [vmem:[#allocation4 + $0x20] sm:$0xff]
    %v79 = vld [vmem:[#allocation4 + $0x28] sm:$0xff]
    %v80 = vld [vmem:[#allocation4 + $0x30] sm:$0xff]
    %v81 = vld [vmem:[#allocation4 + $0x38] sm:$0xff]
    %v82 = vld [vmem:[#allocation4 + $0x40] sm:$0xff]
    %v83 = vld [vmem:[#allocation4 + $0x48] sm:$0xff]
    %v84 = vld [vmem:[#allocation4 + $0x50] sm:$0xff]
    %v85 = vld [vmem:[#allocation4 + $0x58] sm:$0xff]
    %v86 = vld [vmem:[#allocation4 + $0x60] sm:$0xff]
    %v87 = vld [vmem:[#allocation4 + $0x68] sm:$0xff]
    %v88 = vld [vmem:[#allocation4 + $0x70] sm:$0xff]
    %v89 = vld [vmem:[#allocation4 + $0x78] sm:$0xff]
    %v90 = vld [vmem:[#allocation4 + $0x80] sm:$0xff]
    %v91 = vld [vmem:[#allocation4 + $0x88] sm:$0xff]
    %v92 = vld [vmem:[#allocation4 + $0x90] sm:$0xff]
    %v93 = vld [vmem:[#allocation4 + $0x98] sm:$0xff]
    %v94 = vld [vmem:[#allocation4 + $0xa0] sm:$0xff]
    %v95 = vld [vmem:[#allocation4 + $0xa8] sm:$0xff]
    %v96 = vld [vmem:[#allocation4 + $0xb0] sm:$0xff]
    %v97 = vld [vmem:[#allocation4 + $0xb8] sm:$0xff]
    %v98 = vld [vmem:[#allocation4 + $0xc0] sm:$0xff]
    %v99 = vld [vmem:[#allocation4 + $0xc8] sm:$0xff]
    %v100 = vld [vmem:[#allocation4 + $0xd0] sm:$0xff]
    %v101 = vld [vmem:[#allocation4 + $0xd8] sm:$0xff]
    %v102 = vld [vmem:[#allocation4 + $0xe0] sm:$0xff]
    %v103 = vld [vmem:[#allocation4 + $0xe8] sm:$0xff]
    %v104 = vld [vmem:[#allocation4 + $0xf0] sm:$0xff]
    %v105 = vld [vmem:[#allocation4 + $0xf8] sm:$0xff]
    %v106 = vld [vmem:[#allocation4 + $0x100] sm:$0xff]
    %v107 = vld [vmem:[#allocation4 + $0x108] sm:$0xff]
    %v108 = vld [vmem:[#allocation4 + $0x110] sm:$0xff]
    %v109 = vld [vmem:[#allocation4 + $0x118] sm:$0xff]
    %v110 = vld [vmem:[#allocation4 + $0x120] sm:$0xff]
    %v111 = vld [vmem:[#allocation4 + $0x128] sm:$0xff]
    %v112 = vld [vmem:[#allocation4 + $0x130] sm:$0xff]
    %v113 = vld [vmem:[#allocation4 + $0x138] sm:$0xff]
    %v114 = vld [vmem:[#allocation4 + $0x140] sm:$0xff]
    %v115 = vld [vmem:[#allocation4 + $0x148] sm:$0xff]
    %v116 = vld [vmem:[#allocation4 + $0x150] sm:$0xff]
    %v117 = vld [vmem:[#allocation4 + $0x158] sm:$0xff]
    %v118 = vld [vmem:[#allocation4 + $0x160] sm:$0xff]
    %v119 = vld [vmem:[#allocation4 + $0x168] sm:$0xff]
    %v120 = vld [vmem:[#allocation4 + $0x170] sm:$0xff]
    %v121 = vld [vmem:[#allocation4 + $0x178] sm:$0xff]
    %v122 = vld [vmem:[#allocation4 + $0x180] sm:$0xff]
    %v123 = vld [vmem:[#allocation4 + $0x188] sm:$0xff]
    %v124 = vld [vmem:[#allocation4 + $0x190] sm:$0xff]
    %v125 = vld [vmem:[#allocation4 + $0x198] sm:$0xff]
    %v126 = vld [vmem:[#allocation4 + $0x1a0] sm:$0xff]
    %v127 = vld [vmem:[#allocation4 + $0x1a8] sm:$0xff]
    %v128 = vld [vmem:[#allocation4 + $0x1b0] sm:$0xff]
    %v129 = vld [vmem:[#allocation4 + $0x1b8] sm:$0xff]
    %v130 = vld [vmem:[#allocation4 + $0x1c0] sm:$0xff]
    %v131 = vld [vmem:[#allocation4 + $0x1c8] sm:$0xff]
    %v132 = vld [vmem:[#allocation4 + $0x1d0] sm:$0xff]
    %v133 = vld [vmem:[#allocation4 + $0x1d8] sm:$0xff]
    %v134 = vld [vmem:[#allocation4 + $0x1e0] sm:$0xff]
    %v135 = vld [vmem:[#allocation4 + $0x1e8] sm:$0xff]
    %v136 = vld [vmem:[#allocation4 + $0x1f0] sm:$0xff]
    %v137 = vld [vmem:[#allocation4 + $0x1f8] sm:$0xff]
    %v138 = vld [vmem:[#allocation4 + $0x200] sm:$0xff]
    %v139 = vld [vmem:[#allocation4 + $0x208] sm:$0xff]
    %v140 = vld [vmem:[#allocation4 + $0x210] sm:$0xff]
    %v141 = vld [vmem:[#allocation4 + $0x218] sm:$0xff]
    %v142 = vld [vmem:[#allocation4 + $0x220] sm:$0xff]
    %v143 = vld [vmem:[#allocation4 + $0x228] sm:$0xff]
    %v144 = vld [vmem:[#allocation4 + $0x230] sm:$0xff]
    %v145 = vld [vmem:[#allocation4 + $0x238] sm:$0xff]
    %v146 = vld [vmem:[#allocation4 + $0x240] sm:$0xff]
    %v147 = vld [vmem:[#allocation4 + $0x248] sm:$0xff]
    %v148 = vld [vmem:[#allocation4 + $0x250] sm:$0xff]
    %v149 = vld [vmem:[#allocation4 + $0x258] sm:$0xff]
    %v150 = vld [vmem:[#allocation4 + $0x260] sm:$0xff]
    %v151 = vld [vmem:[#allocation4 + $0x268] sm:$0xff]
    %v152 = vld [vmem:[#allocation4 + $0x270] sm:$0xff]
    %v153 = vld [vmem:[#allocation4 + $0x278] sm:$0xff]
    %v154 = vld [vmem:[#allocation4 + $0x280] sm:$0xff]
    %v155 = vld [vmem:[#allocation4 + $0x288] sm:$0xff]
    %v156 = vld [vmem:[#allocation4 + $0x290] sm:$0xff]
    %v157 = vld [vmem:[#allocation4 + $0x298] sm:$0xff]
    %v158 = vld [vmem:[#allocation4 + $0x2a0] sm:$0xff]
    %v159 = vld [vmem:[#allocation4 + $0x2a8] sm:$0xff]
    %v160 = vld [vmem:[#allocation4 + $0x2b0] sm:$0xff]
    %v161 = vld [vmem:[#allocation4 + $0x2b8] sm:$0xff]
    %v162 = vld [vmem:[#allocation4 + $0x2c0] sm:$0xff]
    %v163 = vld [vmem:[#allocation4 + $0x2c8] sm:$0xff]
    %v164 = vld [vmem:[#allocation4 + $0x2d0] sm:$0xff]
    %v165 = vld [vmem:[#allocation4 + $0x2d8] sm:$0xff]
    %v166 = vld [vmem:[#allocation4 + $0x2e0] sm:$0xff]
    %v167 = vld [vmem:[#allocation4 + $0x2e8] sm:$0xff]
    %v168 = vld [vmem:[#allocation4 + $0x2f0] sm:$0xff]
    %v169 = vld [vmem:[#allocation4 + $0x2f8] sm:$0xff]
    %v170 = vld [vmem:[#allocation4 + $0x300] sm:$0xff]
    %v171 = vld [vmem:[#allocation4 + $0x308] sm:$0xff]
    %v172 = vld [vmem:[#allocation4 + $0x310] sm:$0xff]
    %v173 = vld [vmem:[#allocation4 + $0x318] sm:$0xff]
    %v174 = vld [vmem:[#allocation4 + $0x320] sm:$0xff]
    %v175 = vld [vmem:[#allocation4 + $0x328] sm:$0xff]
    %v176 = vld [vmem:[#allocation4 + $0x330] sm:$0xff]
    %v177 = vld [vmem:[#allocation4 + $0x338] sm:$0xff]
    %v178 = vld [vmem:[#allocation4 + $0x340] sm:$0xff]
    %v179 = vld [vmem:[#allocation4 + $0x348] sm:$0xff]
    %v180 = vld [vmem:[#allocation4 + $0x350] sm:$0xff]
    %v181 = vld [vmem:[#allocation4 + $0x358] sm:$0xff]
    %v182 = vld [vmem:[#allocation4 + $0x360] sm:$0xff]
    %v183 = vld [vmem:[#allocation4 + $0x368] sm:$0xff]
    %v184 = vld [vmem:[#allocation4 + $0x370] sm:$0xff]
    %v185 = vld [vmem:[#allocation4 + $0x378] sm:$0xff]
    %v186 = vld [vmem:[#allocation4 + $0x380] sm:$0xff]
    %v187 = vld [vmem:[#allocation4 + $0x388] sm:$0xff]
    %v188 = vld [vmem:[#allocation4 + $0x390] sm:$0xff]
    %v189 = vld [vmem:[#allocation4 + $0x398] sm:$0xff]
    %v190 = vld [vmem:[#allocation4 + $0x3a0] sm:$0xff]
    %v191 = vld [vmem:[#allocation4 + $0x3a8] sm:$0xff]
    %v192 = vld [vmem:[#allocation4 + $0x3b0] sm:$0xff]
    %v193 = vld [vmem:[#allocation4 + $0x3b8] sm:$0xff]
    %v194 = vld [vmem:[#allocation4 + $0x3c0] sm:$0xff]
    %v195 = vld [vmem:[#allocation4 + $0x3c8] sm:$0xff]
    %v196 = vld [vmem:[#allocation4 + $0x3d0] sm:$0xff]
    %v197 = vld [vmem:[#allocation4 + $0x3d8] sm:$0xff]
    %v198 = vld [vmem:[#allocation4 + $0x3e0] sm:$0xff]
    %v199 = vld [vmem:[#allocation4 + $0x3e8] sm:$0xff]
    %v200 = vld [vmem:[#allocation4 + $0x3f0] sm:$0xff]
    %v201 = vld [vmem:[#allocation4 + $0x3f8] sm:$0xff]
    %v202 = vld [vmem:[#allocation4 + $0x400] sm:$0xff]
    %v203 = vld [vmem:[#allocation4 + $0x408] sm:$0xff]
    %v204 = vld [vmem:[#allocation4 + $0x410] sm:$0xff]
    %v205 = vld [vmem:[#allocation4 + $0x418] sm:$0xff]
    %v206 = vld [vmem:[#allocation4 + $0x420] sm:$0xff]
    %v207 = vld [vmem:[#allocation4 + $0x428] sm:$0xff]
    %v208 = vld [vmem:[#allocation4 + $0x430] sm:$0xff]
    %v209 = vld [vmem:[#allocation4 + $0x438] sm:$0xff]
    %v210 = vld [vmem:[#allocation4 + $0x440] sm:$0xff]
    %v211 = vld [vmem:[#allocation4 + $0x448] sm:$0xff]
    %v212 = vld [vmem:[#allocation4 + $0x450] sm:$0xff]
    %v213 = vld [vmem:[#allocation4 + $0x458] sm:$0xff]
    %v214 = vld [vmem:[#allocation4 + $0x460] sm:$0xff]
    %v215 = vld [vmem:[#allocation4 + $0x468] sm:$0xff]
    %v216 = vld [vmem:[#allocation4 + $0x470] sm:$0xff]
    %v217 = vld [vmem:[#allocation4 + $0x478] sm:$0xff]
    %v218 = vld [vmem:[#allocation4 + $0x480] sm:$0xff]
    %v219 = vld [vmem:[#allocation4 + $0x488] sm:$0xff]
    %v220 = vld [vmem:[#allocation4 + $0x490] sm:$0xff]
    %v221 = vld [vmem:[#allocation4 + $0x498] sm:$0xff]
    %v222 = vld [vmem:[#allocation4 + $0x4a0] sm:$0xff]
    %v223 = vld [vmem:[#allocation4 + $0x4a8] sm:$0xff]
    %v224 = vld [vmem:[#allocation4 + $0x4b0] sm:$0xff]
    %v225 = vld [vmem:[#allocation4 + $0x4b8] sm:$0xff]
    %v226 = vld [vmem:[#allocation4 + $0x4c0] sm:$0xff]
    %v227 = vld [vmem:[#allocation4 + $0x4c8] sm:$0xff]
    %v228 = vld [vmem:[#allocation4 + $0x4d0] sm:$0xff]
    %v229 = vld [vmem:[#allocation4 + $0x4d8] sm:$0xff]
    %v230 = vld [vmem:[#allocation4 + $0x4e0] sm:$0xff]
    %v231 = vld [vmem:[#allocation4 + $0x4e8] sm:$0xff]
    %v232 = vld [vmem:[#allocation4 + $0x4f0] sm:$0xff]
    %v233 = vld [vmem:[#allocation4 + $0x4f8] sm:$0xff]
    %v234 = vld [vmem:[#allocation4 + $0x500] sm:$0xff]
    %v235 = vld [vmem:[#allocation4 + $0x508] sm:$0xff]
    %v236 = vld [vmem:[#allocation4 + $0x510] sm:$0xff]
    %v237 = vld [vmem:[#allocation4 + $0x518] sm:$0xff]
    %v238 = vld [vmem:[#allocation4 + $0x520] sm:$0xff]
    %v239 = vld [vmem:[#allocation4 + $0x528] sm:$0xff]
    %v240 = vld [vmem:[#allocation4 + $0x530] sm:$0xff]
    %v241 = vld [vmem:[#allocation4 + $0x538] sm:$0xff]
    %v242 = vld [vmem:[#allocation4 + $0x540] sm:$0xff]
    %v243 = vld [vmem:[#allocation4 + $0x548] sm:$0xff]
    %v244 = vld [vmem:[#allocation4 + $0x550] sm:$0xff]
    %v245 = vld [vmem:[#allocation4 + $0x558] sm:$0xff]
    %v246 = vld [vmem:[#allocation4 + $0x560] sm:$0xff]
    %v247 = vld [vmem:[#allocation4 + $0x568] sm:$0xff]
    %v248 = vld [vmem:[#allocation4 + $0x570] sm:$0xff]
    %v249 = vld [vmem:[#allocation4 + $0x578] sm:$0xff]
    %v250 = vld [vmem:[#allocation4 + $0x580] sm:$0xff]
    %v251 = vld [vmem:[#allocation4 + $0x588] sm:$0xff]
    %v252 = vld [vmem:[#allocation4 + $0x590] sm:$0xff]
    %v253 = vld [vmem:[#allocation4 + $0x598] sm:$0xff]
    %v254 = vld [vmem:[#allocation4 + $0x5a0] sm:$0xff]
    %v255 = vld [vmem:[#allocation4 + $0x5a8] sm:$0xff]
    %v256 = vld [vmem:[#allocation4 + $0x5b0] sm:$0xff]
    %v257 = vld [vmem:[#allocation4 + $0x5b8] sm:$0xff]
    %v258 = vld [vmem:[#allocation4 + $0x5c0] sm:$0xff]
    %v259 = vld [vmem:[#allocation4 + $0x5c8] sm:$0xff]
    %v260 = vld [vmem:[#allocation4 + $0x5d0] sm:$0xff]
    %v261 = vld [vmem:[#allocation4 + $0x5d8] sm:$0xff]
    %v262 = vld [vmem:[#allocation4 + $0x5e0] sm:$0xff]
    %v263 = vld [vmem:[#allocation4 + $0x5e8] sm:$0xff]
    %v264 = vld [vmem:[#allocation4 + $0x5f0] sm:$0xff]
    %v265 = vld [vmem:[#allocation4 + $0x5f8] sm:$0xff]
    %v266 = vld [vmem:[%s2] sm:$0x3f]
    %v268 = vlaneseq
    %v269 = vshrl.u32 %v268, 7
    %v270 = vsub.s32 0, %v269
    %v271 = vrot.slane %v266, %v270
    %v272 = vlaneseq
    %v273 = vshrl.u32 %v272, 7
    %v274 = vsub.s32 1, %v273
    %v275 = vrot.slane %v266, %v274
    %v276 = vlaneseq
    %v277 = vshrl.u32 %v276, 7
    %v278 = vsub.s32 2, %v277
    %v279 = vrot.slane %v266, %v278
    %v280 = vlaneseq
    %v281 = vshrl.u32 %v280, 7
    %v282 = vsub.s32 3, %v281
    %v283 = vrot.slane %v266, %v282
    %v284 = vlaneseq
    %v285 = vshrl.u32 %v284, 7
    %v286 = vsub.s32 4, %v285
    %v287 = vrot.slane %v266, %v286
    %v288 = vlaneseq
    %v289 = vshrl.u32 %v288, 7
    %v290 = vsub.s32 5, %v289
    %v291 = vrot.slane %v266, %v290
    %298 = vmatprep.subr.mxu0 %v75
    %299 = vmatpush1.msra.mxu0 %v74
    %300 = vmatprep.subr.mxu0 %v81
    %301 = vmatpush1.msra.mxu0 %v80
    %302 = vmatprep.subr.mxu0 %v87
    %303 = vmatpush1.msra.mxu0 %v86
    %304 = vmatprep.subr.mxu0 %v93
    %305 = vmatpush1.msra.mxu0 %v92
    %306 = vmatprep.subr.mxu0 %v99
    %307 = vmatpush1.msra.mxu0 %v98
    %308 = vmatprep.subr.mxu0 %v105
    %309 = vmatpush1.msra.mxu0 %v104
    %310 = vmatprep.subr.mxu0 %v111
    %311 = vmatpush1.msra.mxu0 %v110
    %312 = vmatprep.subr.mxu0 %v117
    %313 = vmatpush1.msra.mxu0 %v116
    %314 = vmatprep.subr.mxu0 %v123
    %315 = vmatpush1.msra.mxu0 %v122
    %316 = vmatprep.subr.mxu0 %v129
    %317 = vmatpush1.msra.mxu0 %v128
    %318 = vmatprep.subr.mxu0 %v135
    %319 = vmatpush1.msra.mxu0 %v134
    %320 = vmatprep.subr.mxu0 %v141
    %321 = vmatpush1.msra.mxu0 %v140
    %322 = vmatprep.subr.mxu0 %v147
    %323 = vmatpush1.msra.mxu0 %v146
    %324 = vmatprep.subr.mxu0 %v153
    %325 = vmatpush1.msra.mxu0 %v152
    %326 = vmatprep.subr.mxu0 %v159
    %327 = vmatpush1.msra.mxu0 %v158
    %328 = vmatprep.subr.mxu0 %v165
    %329 = vmatpush1.msra.mxu0 %v164
    %330 = vmatprep.subr.mxu0 %v171
    %331 = vmatpush1.msra.mxu0 %v170
    %332 = vmatprep.subr.mxu0 %v177
    %333 = vmatpush1.msra.mxu0 %v176
    %334 = vmatprep.subr.mxu0 %v183
    %335 = vmatpush1.msra.mxu0 %v182
    %336 = vmatprep.subr.mxu0 %v189
    %337 = vmatpush1.msra.mxu0 %v188
    %338 = vmatprep.subr.mxu0 %v195
    %339 = vmatpush1.msra.mxu0 %v194
    %340 = vmatprep.subr.mxu0 %v201
    %341 = vmatpush1.msra.mxu0 %v200
    %342 = vmatprep.subr.mxu0 %v207
    %343 = vmatpush1.msra.mxu0 %v206
    %344 = vmatprep.subr.mxu0 %v213
    %345 = vmatpush1.msra.mxu0 %v212
    %346 = vmatprep.subr.mxu0 %v219
    %347 = vmatpush1.msra.mxu0 %v218
    %348 = vmatprep.subr.mxu0 %v225
    %349 = vmatpush1.msra.mxu0 %v224
    %350 = vmatprep.subr.mxu0 %v231
    %351 = vmatpush1.msra.mxu0 %v230
    %352 = vmatprep.subr.mxu0 %v237
    %353 = vmatpush1.msra.mxu0 %v236
    %354 = vmatprep.subr.mxu0 %v243
    %355 = vmatpush1.msra.mxu0 %v242
    %356 = vmatprep.subr.mxu0 %v249
    %357 = vmatpush1.msra.mxu0 %v248
    %358 = vmatprep.subr.mxu0 %v255
    %359 = vmatpush1.msra.mxu0 %v254
    %360 = vmatprep.subr.mxu0 %v261
    %361 = vmatpush1.msra.mxu0 %v260
    %362 = vmatprep.mubr.f32.mxu0 %v59
    %363 = vmatmul.mubr.f32.gmra.mrb[0].mxu0 %v58
    %v364 = vpop.f32.mrb[0].mxu0
    %v365 = vadd.f32 %v271, %v364
    %v366 = vpop.f32.mrb[0].mxu0
    %v367 = vadd.f32 %v275, %v366
    %368 = vmatprep.mubr.f32.mxu0 %v61
    %369 = vmatmul.mubr.f32.gmra.mrb[0].mxu0 %v60
    %v370 = vpop.f32.mrb[0].mxu0
    %v371 = vadd.f32 %v271, %v370
    %v372 = vpop.f32.mrb[0].mxu0
    %v373 = vadd.f32 %v275, %v372
    %374 = vmatprep.mubr.f32.mxu0 %v63
    %375 = vmatmul.mubr.f32.gmra.mrb[0].mxu0 %v62
    %v376 = vpop.f32.mrb[0].mxu0
    %v377 = vadd.f32 %v271, %v376
    %v378 = vpop.f32.mrb[0].mxu0
    %v379 = vadd.f32 %v275, %v378
    %380 = vmatprep.mubr.f32.mxu0 %v65
    %381 = vmatmul.mubr.f32.gmra.mrb[0].mxu0 %v64
    %v382 = vpop.f32.mrb[0].mxu0
    %v383 = vadd.f32 %v271, %v382
    %v384 = vpop.f32.mrb[0].mxu0
    %v385 = vadd.f32 %v275, %v384
    %386 = vmatprep.mubr.f32.mxu0 %v67
    %387 = vmatmul.mubr.f32.gmra.mrb[0].mxu0 %v66
    %v388 = vpop.f32.mrb[0].mxu0
    %v389 = vadd.f32 %v271, %v388
    %v390 = vpop.f32.mrb[0].mxu0
    %v391 = vadd.f32 %v275, %v390
    %392 = vmatprep.mubr.f32.mxu0 %v69
    %393 = vmatmul.mubr.f32.gmra.mrb[0].mxu0 %v68
    %v394 = vpop.f32.mrb[0].mxu0
    %v395 = vadd.f32 %v271, %v394
    %v396 = vpop.f32.mrb[0].mxu0
    %v397 = vadd.f32 %v275, %v396
    %398 = vmatprep.mubr.f32.mxu0 %v71
    %399 = vmatmul.mubr.f32.gmra.mrb[0].mxu0 %v70
    %v400 = vpop.f32.mrb[0].mxu0
    %v401 = vadd.f32 %v271, %v400
    %v402 = vpop.f32.mrb[0].mxu0
    %v403 = vadd.f32 %v275, %v402
    %404 = vmatprep.mubr.f32.mxu0 %v73
    %405 = vmatmul.mubr.f32.gmra.mrb[0].mxu0 %v72
    %v406 = vpop.f32.mrb[0].mxu0
    %v407 = vadd.f32 %v271, %v406
    %v408 = vpop.f32.mrb[0].mxu0
    %v409 = vadd.f32 %v275, %v408
    %410 = vdwg.mxu0
    %411 = vmatprep.subr.mxu0 %v77
    %412 = vmatpush1.msra.mxu0 %v76
    %413 = vmatprep.subr.mxu0 %v83
    %414 = vmatpush1.msra.mxu0 %v82
    %415 = vmatprep.subr.mxu0 %v89
    %416 = vmatpush1.msra.mxu0 %v88
    %417 = vmatprep.subr.mxu0 %v95
    %418 = vmatpush1.msra.mxu0 %v94
    %419 = vmatprep.subr.mxu0 %v101
    %420 = vmatpush1.msra.mxu0 %v100
    %421 = vmatprep.subr.mxu0 %v107
    %422 = vmatpush1.msra.mxu0 %v106
    %423 = vmatprep.subr.mxu0 %v113
    %424 = vmatpush1.msra.mxu0 %v112
    %425 = vmatprep.subr.mxu0 %v119
    %426 = vmatpush1.msra.mxu0 %v118
    %427 = vmatprep.subr.mxu0 %v125
    %428 = vmatpush1.msra.mxu0 %v124
    %429 = vmatprep.subr.mxu0 %v131
    %430 = vmatpush1.msra.mxu0 %v130
    %431 = vmatprep.subr.mxu0 %v137
    %432 = vmatpush1.msra.mxu0 %v136
    %433 = vmatprep.subr.mxu0 %v143
    %434 = vmatpush1.msra.mxu0 %v142
    %435 = vmatprep.subr.mxu0 %v149
    %436 = vmatpush1.msra.mxu0 %v148
    %437 = vmatprep.subr.mxu0 %v155
    %438 = vmatpush1.msra.mxu0 %v154
    %439 = vmatprep.subr.mxu0 %v161
    %440 = vmatpush1.msra.mxu0 %v160
    %441 = vmatprep.subr.mxu0 %v167
    %442 = vmatpush1.msra.mxu0 %v166
    %443 = vmatprep.subr.mxu0 %v173
    %444 = vmatpush1.msra.mxu0 %v172
    %445 = vmatprep.subr.mxu0 %v179
    %446 = vmatpush1.msra.mxu0 %v178
    %447 = vmatprep.subr.mxu0 %v185
    %448 = vmatpush1.msra.mxu0 %v184
    %449 = vmatprep.subr.mxu0 %v191
    %450 = vmatpush1.msra.mxu0 %v190
    %451 = vmatprep.subr.mxu0 %v197
    %452 = vmatpush1.msra.mxu0 %v196
    %453 = vmatprep.subr.mxu0 %v203
    %454 = vmatpush1.msra.mxu0 %v202
    %455 = vmatprep.subr.mxu0 %v209
    %456 = vmatpush1.msra.mxu0 %v208
    %457 = vmatprep.subr.mxu0 %v215
    %458 = vmatpush1.msra.mxu0 %v214
    %459 = vmatprep.subr.mxu0 %v221
    %460 = vmatpush1.msra.mxu0 %v220
    %461 = vmatprep.subr.mxu0 %v227
    %462 = vmatpush1.msra.mxu0 %v226
    %463 = vmatprep.subr.mxu0 %v233
    %464 = vmatpush1.msra.mxu0 %v232
    %465 = vmatprep.subr.mxu0 %v239
    %466 = vmatpush1.msra.mxu0 %v238
    %467 = vmatprep.subr.mxu0 %v245
    %468 = vmatpush1.msra.mxu0 %v244
    %469 = vmatprep.subr.mxu0 %v251
    %470 = vmatpush1.msra.mxu0 %v250
    %471 = vmatprep.subr.mxu0 %v257
    %472 = vmatpush1.msra.mxu0 %v256
    %473 = vmatprep.subr.mxu0 %v263
    %474 = vmatpush1.msra.mxu0 %v262
    %475 = vmatprep.mubr.f32.mxu0 %v59
    %476 = vmatmul.mubr.f32.gmra.mrb[0].mxu0 %v58
    %v477 = vpop.f32.mrb[0].mxu0
    %v478 = vadd.f32 %v279, %v477
    %v479 = vpop.f32.mrb[0].mxu0
    %v480 = vadd.f32 %v283, %v479
    %481 = vmatprep.mubr.f32.mxu0 %v61
    %482 = vmatmul.mubr.f32.gmra.mrb[0].mxu0 %v60
    %v483 = vpop.f32.mrb[0].mxu0
    %v484 = vadd.f32 %v279, %v483
    %v485 = vpop.f32.mrb[0].mxu0
    %v486 = vadd.f32 %v283, %v485
    %487 = vmatprep.mubr.f32.mxu0 %v63
    %488 = vmatmul.mubr.f32.gmra.mrb[0].mxu0 %v62
    %v489 = vpop.f32.mrb[0].mxu0
    %v490 = vadd.f32 %v279, %v489
    %v491 = vpop.f32.mrb[0].mxu0
    %v492 = vadd.f32 %v283, %v491
    %493 = vmatprep.mubr.f32.mxu0 %v65
    %494 = vmatmul.mubr.f32.gmra.mrb[0].mxu0 %v64
    %v495 = vpop.f32.mrb[0].mxu0
    %v496 = vadd.f32 %v279, %v495
    %v497 = vpop.f32.mrb[0].mxu0
    %v498 = vadd.f32 %v283, %v497
    %499 = vmatprep.mubr.f32.mxu0 %v67
    %500 = vmatmul.mubr.f32.gmra.mrb[0].mxu0 %v66
    %v501 = vpop.f32.mrb[0].mxu0
    %v502 = vadd.f32 %v279, %v501
    %v503 = vpop.f32.mrb[0].mxu0
    %v504 = vadd.f32 %v283, %v503
    %505 = vmatprep.mubr.f32.mxu0 %v69
    %506 = vmatmul.mubr.f32.gmra.mrb[0].mxu0 %v68
    %v507 = vpop.f32.mrb[0].mxu0
    %v508 = vadd.f32 %v279, %v507
    %v509 = vpop.f32.mrb[0].mxu0
    %v510 = vadd.f32 %v283, %v509
    %511 = vmatprep.mubr.f32.mxu0 %v71
    %512 = vmatmul.mubr.f32.gmra.mrb[0].mxu0 %v70
    %v513 = vpop.f32.mrb[0].mxu0
    %v514 = vadd.f32 %v279, %v513
    %v515 = vpop.f32.mrb[0].mxu0
    %v516 = vadd.f32 %v283, %v515
    %517 = vmatprep.mubr.f32.mxu0 %v73
    %518 = vmatmul.mubr.f32.gmra.mrb[0].mxu0 %v72
    %v519 = vpop.f32.mrb[0].mxu0
    %v520 = vadd.f32 %v279, %v519
    %v521 = vpop.f32.mrb[0].mxu0
    %v522 = vadd.f32 %v283, %v521
    %523 = vdwg.mxu0
    %524 = vmatprep.subr.mxu0 %v79
    %525 = vmatpush1.msra.mxu0 %v78
    %526 = vmatprep.subr.mxu0 %v85
    %527 = vmatpush1.msra.mxu0 %v84
    %528 = vmatprep.subr.mxu0 %v91
    %529 = vmatpush1.msra.mxu0 %v90
    %530 = vmatprep.subr.mxu0 %v97
    %531 = vmatpush1.msra.mxu0 %v96
    %532 = vmatprep.subr.mxu0 %v103
    %533 = vmatpush1.msra.mxu0 %v102
    %534 = vmatprep.subr.mxu0 %v109
    %535 = vmatpush1.msra.mxu0 %v108
    %536 = vmatprep.subr.mxu0 %v115
    %537 = vmatpush1.msra.mxu0 %v114
    %538 = vmatprep.subr.mxu0 %v121
    %539 = vmatpush1.msra.mxu0 %v120
    %540 = vmatprep.subr.mxu0 %v127
    %541 = vmatpush1.msra.mxu0 %v126
    %542 = vmatprep.subr.mxu0 %v133
    %543 = vmatpush1.msra.mxu0 %v132
    %544 = vmatprep.subr.mxu0 %v139
    %545 = vmatpush1.msra.mxu0 %v138
    %546 = vmatprep.subr.mxu0 %v145
    %547 = vmatpush1.msra.mxu0 %v144
    %548 = vmatprep.subr.mxu0 %v151
    %549 = vmatpush1.msra.mxu0 %v150
    %550 = vmatprep.subr.mxu0 %v157
    %551 = vmatpush1.msra.mxu0 %v156
    %552 = vmatprep.subr.mxu0 %v163
    %553 = vmatpush1.msra.mxu0 %v162
    %554 = vmatprep.subr.mxu0 %v169
    %555 = vmatpush1.msra.mxu0 %v168
    %556 = vmatprep.subr.mxu0 %v175
    %557 = vmatpush1.msra.mxu0 %v174
    %558 = vmatprep.subr.mxu0 %v181
    %559 = vmatpush1.msra.mxu0 %v180
    %560 = vmatprep.subr.mxu0 %v187
    %561 = vmatpush1.msra.mxu0 %v186
    %562 = vmatprep.subr.mxu0 %v193
    %563 = vmatpush1.msra.mxu0 %v192
    %564 = vmatprep.subr.mxu0 %v199
    %565 = vmatpush1.msra.mxu0 %v198
    %566 = vmatprep.subr.mxu0 %v205
    %567 = vmatpush1.msra.mxu0 %v204
    %568 = vmatprep.subr.mxu0 %v211
    %569 = vmatpush1.msra.mxu0 %v210
    %570 = vmatprep.subr.mxu0 %v217
    %571 = vmatpush1.msra.mxu0 %v216
    %572 = vmatprep.subr.mxu0 %v223
    %573 = vmatpush1.msra.mxu0 %v222
    %574 = vmatprep.subr.mxu0 %v229
    %575 = vmatpush1.msra.mxu0 %v228
    %576 = vmatprep.subr.mxu0 %v235
    %577 = vmatpush1.msra.mxu0 %v234
    %578 = vmatprep.subr.mxu0 %v241
    %579 = vmatpush1.msra.mxu0 %v240
    %580 = vmatprep.subr.mxu0 %v247
    %581 = vmatpush1.msra.mxu0 %v246
    %582 = vmatprep.subr.mxu0 %v253
    %583 = vmatpush1.msra.mxu0 %v252
    %584 = vmatprep.subr.mxu0 %v259
    %585 = vmatpush1.msra.mxu0 %v258
    %586 = vmatprep.subr.mxu0 %v265
    %587 = vmatpush1.msra.mxu0 %v264
    %588 = vmatprep.mubr.f32.mxu0 %v59
    %589 = vmatmul.mubr.f32.gmra.mrb[0].mxu0 %v58
    %v590 = vpop.f32.mrb[0].mxu0
    %v591 = vadd.f32 %v287, %v590
    %v592 = vpop.f32.mrb[0].mxu0
    %v593 = vadd.f32 %v291, %v592
    %594 = vmatprep.mubr.f32.mxu0 %v61
    %595 = vmatmul.mubr.f32.gmra.mrb[0].mxu0 %v60
    %v596 = vpop.f32.mrb[0].mxu0
    %v597 = vadd.f32 %v287, %v596
    %v598 = vpop.f32.mrb[0].mxu0
    %v599 = vadd.f32 %v291, %v598
    %600 = vmatprep.mubr.f32.mxu0 %v63
    %601 = vmatmul.mubr.f32.gmra.mrb[0].mxu0 %v62
    %v602 = vpop.f32.mrb[0].mxu0
    %v603 = vadd.f32 %v287, %v602
    %v604 = vpop.f32.mrb[0].mxu0
    %v605 = vadd.f32 %v291, %v604
    %606 = vmatprep.mubr.f32.mxu0 %v65
    %607 = vmatmul.mubr.f32.gmra.mrb[0].mxu0 %v64
    %v608 = vpop.f32.mrb[0].mxu0
    %v609 = vadd.f32 %v287, %v608
    %v610 = vpop.f32.mrb[0].mxu0
    %v611 = vadd.f32 %v291, %v610
    %612 = vmatprep.mubr.f32.mxu0 %v67
    %613 = vmatmul.mubr.f32.gmra.mrb[0].mxu0 %v66
    %v614 = vpop.f32.mrb[0].mxu0
    %v615 = vadd.f32 %v287, %v614
    %v616 = vpop.f32.mrb[0].mxu0
    %v617 = vadd.f32 %v291, %v616
    %618 = vmatprep.mubr.f32.mxu0 %v69
    %619 = vmatmul.mubr.f32.gmra.mrb[0].mxu0 %v68
    %v620 = vpop.f32.mrb[0].mxu0
    %v621 = vadd.f32 %v287, %v620
    %v622 = vpop.f32.mrb[0].mxu0
    %v623 = vadd.f32 %v291, %v622
    %624 = vmatprep.mubr.f32.mxu0 %v71
    %625 = vmatmul.mubr.f32.gmra.mrb[0].mxu0 %v70
    %v626 = vpop.f32.mrb[0].mxu0
    %v627 = vadd.f32 %v287, %v626
    %v628 = vpop.f32.mrb[0].mxu0
    %v629 = vadd.f32 %v291, %v628
    %630 = vmatprep.mubr.f32.mxu0 %v73
    %631 = vmatmul.mubr.f32.gmra.mrb[0].mxu0 %v72
    %v632 = vpop.f32.mrb[0].mxu0
    %v633 = vadd.f32 %v287, %v632
    %v634 = vpop.f32.mrb[0].mxu0
    %v635 = vadd.f32 %v291, %v634
    %636 = vdwg.mxu0
    %v637 = vld [vmem:[#allocation6] sm:$0xff]
    %v638 = vld [vmem:[#allocation6 + $0x8] sm:$0xff]
    %v639 = vld [vmem:[#allocation6 + $0x10] sm:$0xff]
    %v640 = vld [vmem:[#allocation6 + $0x18] sm:$0xff]
    %vm641 = vcmask 523264
    %v643 = vsel %vm641, %v365, 0
    %v646 = vsel %vm641, %v371, 0
    %v649 = vsel %vm641, %v377, 0
    %v652 = vsel %vm641, %v383, 0
    %v655 = vsel %vm641, %v478, 0
    %v658 = vsel %vm641, %v484, 0
    %v661 = vsel %vm641, %v490, 0
    %v664 = vsel %vm641, %v496, 0
    %666 = vmatprep.subr.mxu0 0.0
    %667 = vmatpush1.xpose.msra.mxu0 %v655
    %668 = vmatprep.subr.mxu0 0.0
    %669 = vmatpush1.xpose.msra.mxu0 %v658
    %670 = vmatprep.subr.mxu0 0.0
    %671 = vmatpush1.xpose.msra.mxu0 %v661
    %672 = vmatprep.subr.mxu0 0.0
    %673 = vmatpush1.xpose.msra.mxu0 %v664
    %674 = vmatprep.subr.mxu0 0.0
    %675 = vmatpush1.xpose.msra.mxu0 0.0
    %676 = vmatprep.subr.mxu0 0.0
    %677 = vmatpush1.xpose.msra.mxu0 0.0
    %678 = vmatprep.subr.mxu0 0.0
    %679 = vmatpush1.xpose.msra.mxu0 0.0
    %680 = vmatprep.subr.mxu0 0.0
    %681 = vmatpush1.xpose.msra.mxu0 0.0
    %682 = vmatprep.subr.mxu0 0.0
    %683 = vmatpush1.xpose.msra.mxu0 0.0
    %684 = vmatprep.subr.mxu0 0.0
    %685 = vmatpush1.xpose.msra.mxu0 0.0
    %686 = vmatprep.subr.mxu0 0.0
    %687 = vmatpush1.xpose.msra.mxu0 0.0
    %688 = vmatprep.subr.mxu0 0.0
    %689 = vmatpush1.xpose.msra.mxu0 0.0
    %690 = vmatprep.subr.mxu0 0.0
    %691 = vmatpush1.xpose.msra.mxu0 0.0
    %692 = vmatprep.subr.mxu0 0.0
    %693 = vmatpush1.xpose.msra.mxu0 0.0
    %694 = vmatprep.subr.mxu0 0.0
    %695 = vmatpush1.xpose.msra.mxu0 0.0
    %696 = vmatprep.subr.mxu0 0.0
    %697 = vmatpush1.xpose.msra.mxu0 0.0
    %698 = vmatprep.subr.mxu0 0.0
    %699 = vmatpush1.xpose.msra.mxu0 0.0
    %700 = vmatprep.subr.mxu0 0.0
    %701 = vmatpush1.xpose.msra.mxu0 0.0
    %702 = vmatprep.subr.mxu0 0.0
    %703 = vmatpush1.xpose.msra.mxu0 0.0
    %704 = vmatprep.subr.mxu0 0.0
    %705 = vmatpush1.xpose.msra.mxu0 0.0
    %706 = vmatprep.subr.mxu0 0.0
    %707 = vmatpush1.xpose.msra.mxu0 0.0
    %708 = vmatprep.subr.mxu0 0.0
    %709 = vmatpush1.xpose.msra.mxu0 0.0
    %710 = vmatprep.subr.mxu0 0.0
    %711 = vmatpush1.xpose.msra.mxu0 0.0
    %712 = vmatprep.subr.mxu0 0.0
    %713 = vmatpush1.xpose.msra.mxu0 0.0
    %714 = vmatprep.subr.mxu0 0.0
    %715 = vmatpush1.xpose.msra.mxu0 0.0
    %716 = vmatprep.subr.mxu0 0.0
    %717 = vmatpush1.xpose.msra.mxu0 0.0
    %718 = vmatprep.subr.mxu0 0.0
    %719 = vmatpush1.xpose.msra.mxu0 0.0
    %720 = vmatprep.subr.mxu0 0.0
    %721 = vmatpush1.xpose.msra.mxu0 0.0
    %722 = vmatprep.subr.mxu0 0.0
    %723 = vmatpush1.xpose.msra.mxu0 0.0
    %724 = vmatprep.subr.mxu0 0.0
    %725 = vmatpush1.xpose.msra.mxu0 0.0
    %726 = vmatprep.subr.mxu0 0.0
    %727 = vmatpush1.xpose.msra.mxu0 0.0
    %728 = vmatprep.subr.mxu0 0.0
    %729 = vmatpush1.xpose.msra.mxu0 0.0
    %730 = vmatprep.mubr.f32.mxu0 0.0
    %731 = vmatmul.mubr.f32.gmra.mrb[0].mxu0 %v643
    %v732 = vpop.f32.mrb[0].mxu0
    %v733 = vadd.f32 %v637, %v732
    %v734 = vpop.f32.mrb[0].mxu0
    %735 = vmatprep.mubr.f32.mxu0 0.0
    %736 = vmatmul.mubr.f32.gmra.mrb[0].mxu0 %v646
    %v737 = vpop.f32.mrb[0].mxu0
    %v738 = vadd.f32 %v638, %v737
    %v739 = vpop.f32.mrb[0].mxu0
    %740 = vmatprep.mubr.f32.mxu0 0.0
    %741 = vmatmul.mubr.f32.gmra.mrb[0].mxu0 %v649
    %v742 = vpop.f32.mrb[0].mxu0
    %v743 = vadd.f32 %v639, %v742
    %v744 = vpop.f32.mrb[0].mxu0
    %745 = vmatprep.mubr.f32.mxu0 0.0
    %746 = vmatmul.mubr.f32.gmra.mrb[0].mxu0 %v652
    %v747 = vpop.f32.mrb[0].mxu0
    %v748 = vadd.f32 %v640, %v747
    %v749 = vpop.f32.mrb[0].mxu0
    %750 = vdwg.mxu0
    %vm751 = vcmask 261120
    %v752 = vsel %vm751, %v733, -inf
    %753 = vmax.xlane.f32.xlu0 %v752
    %v754 = vpop.xlane.xlu0 %753
    %v755 = vsel %vm751, %v738, -inf
    %756 = vmax.xlane.f32.xlu0 %v755
    %v757 = vpop.xlane.xlu0 %756
    %v758 = vsel %vm751, %v743, -inf
    %759 = vmax.xlane.f32.xlu0 %v758
    %v760 = vpop.xlane.xlu0 %759
    %v761 = vsel %vm751, %v748, -inf
    %762 = vmax.xlane.f32.xlu0 %v761
    %v763 = vpop.xlane.xlu0 %762
    %v764 = vsub.f32 %v733, %v754
    %v765 = vsub.f32 %v738, %v757
    %v766 = vsub.f32 %v743, %v760
    %v767 = vsub.f32 %v748, %v763
    %v768 = vmul.f32 %v764, 1.442695
    %v769 = vpow.pop %v768
    %v770 = vmul.f32 %v765, 1.442695
    %v771 = vpow.pop %v770
    %v772 = vmul.f32 %v766, 1.442695
    %v773 = vpow.pop %v772
    %v774 = vmul.f32 %v767, 1.442695
    %v775 = vpow.pop %v774
    %v776 = vsel %vm751, %v769, 0.0
    %777 = vadd.xlane.f32.xlu0 %v776
    %v778 = vpop.xlane.xlu0 %777
    %v779 = vsel %vm751, %v771, 0.0
    %780 = vadd.xlane.f32.xlu0 %v779
    %v781 = vpop.xlane.xlu0 %780
    %v782 = vsel %vm751, %v773, 0.0
    %783 = vadd.xlane.f32.xlu0 %v782
    %v784 = vpop.xlane.xlu0 %783
    %v785 = vsel %vm751, %v775, 0.0
    %786 = vadd.xlane.f32.xlu0 %v785
    %v787 = vpop.xlane.xlu0 %786
    %v788 = vrcp.pop %v778
    %v789 = vrcp.pop %v781
    %v790 = vrcp.pop %v784
    %v791 = vrcp.pop %v787
    %v793 = vsel %vm751, %v769, 0
    %v796 = vsel %vm751, %v771, 0
    %v799 = vsel %vm751, %v773, 0
    %v802 = vsel %vm751, %v775, 0
    %804 = vmatprep.subr.mxu0 0.0
    %805 = vmatpush1.msra.mxu0 %v591
    %806 = vmatprep.subr.mxu0 0.0
    %807 = vmatpush1.msra.mxu0 %v597
    %808 = vmatprep.subr.mxu0 0.0
    %809 = vmatpush1.msra.mxu0 %v603
    %810 = vmatprep.subr.mxu0 0.0
    %811 = vmatpush1.msra.mxu0 %v609
    %812 = vmatprep.subr.mxu0 0.0
    %813 = vmatpush1.msra.mxu0 0.0
    %814 = vmatprep.subr.mxu0 0.0
    %815 = vmatpush1.msra.mxu0 0.0
    %816 = vmatprep.subr.mxu0 0.0
    %817 = vmatpush1.msra.mxu0 0.0
    %818 = vmatprep.subr.mxu0 0.0
    %819 = vmatpush1.msra.mxu0 0.0
    %820 = vmatprep.subr.mxu0 0.0
    %821 = vmatpush1.msra.mxu0 0.0
    %822 = vmatprep.subr.mxu0 0.0
    %823 = vmatpush1.msra.mxu0 0.0
    %824 = vmatprep.subr.mxu0 0.0
    %825 = vmatpush1.msra.mxu0 0.0
    %826 = vmatprep.subr.mxu0 0.0
    %827 = vmatpush1.msra.mxu0 0.0
    %828 = vmatprep.subr.mxu0 0.0
    %829 = vmatpush1.msra.mxu0 0.0
    %830 = vmatprep.subr.mxu0 0.0
    %831 = vmatpush1.msra.mxu0 0.0
    %832 = vmatprep.subr.mxu0 0.0
    %833 = vmatpush1.msra.mxu0 0.0
    %834 = vmatprep.subr.mxu0 0.0
    %835 = vmatpush1.msra.mxu0 0.0
    %836 = vmatprep.subr.mxu0 0.0
    %837 = vmatpush1.msra.mxu0 0.0
    %838 = vmatprep.subr.mxu0 0.0
    %839 = vmatpush1.msra.mxu0 0.0
    %840 = vmatprep.subr.mxu0 0.0
    %841 = vmatpush1.msra.mxu0 0.0
    %842 = vmatprep.subr.mxu0 0.0
    %843 = vmatpush1.msra.mxu0 0.0
    %844 = vmatprep.subr.mxu0 0.0
    %845 = vmatpush1.msra.mxu0 0.0
    %846 = vmatprep.subr.mxu0 0.0
    %847 = vmatpush1.msra.mxu0 0.0
    %848 = vmatprep.subr.mxu0 0.0
    %849 = vmatpush1.msra.mxu0 0.0
    %850 = vmatprep.subr.mxu0 0.0
    %851 = vmatpush1.msra.mxu0 0.0
    %852 = vmatprep.subr.mxu0 0.0
    %853 = vmatpush1.msra.mxu0 0.0
    %854 = vmatprep.subr.mxu0 0.0
    %855 = vmatpush1.msra.mxu0 0.0
    %856 = vmatprep.subr.mxu0 0.0
    %857 = vmatpush1.msra.mxu0 0.0
    %858 = vmatprep.subr.mxu0 0.0
    %859 = vmatpush1.msra.mxu0 0.0
    %860 = vmatprep.subr.mxu0 0.0
    %861 = vmatpush1.msra.mxu0 0.0
    %862 = vmatprep.subr.mxu0 0.0
    %863 = vmatpush1.msra.mxu0 0.0
    %864 = vmatprep.subr.mxu0 0.0
    %865 = vmatpush1.msra.mxu0 0.0
    %866 = vmatprep.subr.mxu0 0.0
    %867 = vmatpush1.msra.mxu0 0.0
    %868 = vmatprep.mubr.f32.mxu0 0.0
    %869 = vmatmul.mubr.f32.gmra.mrb[0].mxu0 %v793
    %v870 = vpop.f32.mrb[0].mxu0
    %v871 = vadd.f32 0.0, %v870
    %v872 = vpop.f32.mrb[0].mxu0
    %873 = vmatprep.mubr.f32.mxu0 0.0
    %874 = vmatmul.mubr.f32.gmra.mrb[0].mxu0 %v796
    %v875 = vpop.f32.mrb[0].mxu0
    %v876 = vadd.f32 0.0, %v875
    %v877 = vpop.f32.mrb[0].mxu0
    %878 = vmatprep.mubr.f32.mxu0 0.0
    %879 = vmatmul.mubr.f32.gmra.mrb[0].mxu0 %v799
    %v880 = vpop.f32.mrb[0].mxu0
    %v881 = vadd.f32 0.0, %v880
    %v882 = vpop.f32.mrb[0].mxu0
    %883 = vmatprep.mubr.f32.mxu0 0.0
    %884 = vmatmul.mubr.f32.gmra.mrb[0].mxu0 %v802
    %v885 = vpop.f32.mrb[0].mxu0
    %v886 = vadd.f32 0.0, %v885
    %v887 = vpop.f32.mrb[0].mxu0
    %888 = vdwg.mxu0
    %v889 = vmul.f32 %v871, %v788
    %v890 = vmul.f32 %v876, %v789
    %v891 = vmul.f32 %v881, %v790
    %v892 = vmul.f32 %v886, %v791
    %893 = vrot.lane.b32.xlu0 %v365, 64
    %v894 = vpop.permute.xlu0 %893
    %895 = vrot.lane.b32.xlu0 %v371, 64
    %v896 = vpop.permute.xlu0 %895
    %897 = vrot.lane.b32.xlu0 %v377, 64
    %v898 = vpop.permute.xlu0 %897
    %899 = vrot.lane.b32.xlu0 %v383, 64
    %v900 = vpop.permute.xlu0 %899
    %901 = vrot.lane.b32.xlu0 %v478, 64
    %v902 = vpop.permute.xlu0 %901
    %903 = vrot.lane.b32.xlu0 %v484, 64
    %v904 = vpop.permute.xlu0 %903
    %905 = vrot.lane.b32.xlu0 %v490, 64
    %v906 = vpop.permute.xlu0 %905
    %907 = vrot.lane.b32.xlu0 %v496, 64
    %v908 = vpop.permute.xlu0 %907
    %v909 = vsel %vm641, %v894, 0
    %v911 = vsel %vm641, %v896, 0
    %v913 = vsel %vm641, %v898, 0
    %v915 = vsel %vm641, %v900, 0
    %v917 = vsel %vm641, %v902, 0
    %v919 = vsel %vm641, %v904, 0
    %v921 = vsel %vm641, %v906, 0
    %v923 = vsel %vm641, %v908, 0
    %925 = vmatprep.subr.mxu0 0.0
    %926 = vmatpush1.xpose.msra.mxu0 %v917
    %927 = vmatprep.subr.mxu0 0.0
    %928 = vmatpush1.xpose.msra.mxu0 %v919
    %929 = vmatprep.subr.mxu0 0.0
    %930 = vmatpush1.xpose.msra.mxu0 %v921
    %931 = vmatprep.subr.mxu0 0.0
    %932 = vmatpush1.xpose.msra.mxu0 %v923
    %933 = vmatprep.subr.mxu0 0.0
    %934 = vmatpush1.xpose.msra.mxu0 0.0
    %935 = vmatprep.subr.mxu0 0.0
    %936 = vmatpush1.xpose.msra.mxu0 0.0
    %937 = vmatprep.subr.mxu0 0.0
    %938 = vmatpush1.xpose.msra.mxu0 0.0
    %939 = vmatprep.subr.mxu0 0.0
    %940 = vmatpush1.xpose.msra.mxu0 0.0
    %941 = vmatprep.subr.mxu0 0.0
    %942 = vmatpush1.xpose.msra.mxu0 0.0
    %943 = vmatprep.subr.mxu0 0.0
    %944 = vmatpush1.xpose.msra.mxu0 0.0
    %945 = vmatprep.subr.mxu0 0.0
    %946 = vmatpush1.xpose.msra.mxu0 0.0
    %947 = vmatprep.subr.mxu0 0.0
    %948 = vmatpush1.xpose.msra.mxu0 0.0
    %949 = vmatprep.subr.mxu0 0.0
    %950 = vmatpush1.xpose.msra.mxu0 0.0
    %951 = vmatprep.subr.mxu0 0.0
    %952 = vmatpush1.xpose.msra.mxu0 0.0
    %953 = vmatprep.subr.mxu0 0.0
    %954 = vmatpush1.xpose.msra.mxu0 0.0
    %955 = vmatprep.subr.mxu0 0.0
    %956 = vmatpush1.xpose.msra.mxu0 0.0
    %957 = vmatprep.subr.mxu0 0.0
    %958 = vmatpush1.xpose.msra.mxu0 0.0
    %959 = vmatprep.subr.mxu0 0.0
    %960 = vmatpush1.xpose.msra.mxu0 0.0
    %961 = vmatprep.subr.mxu0 0.0
    %962 = vmatpush1.xpose.msra.mxu0 0.0
    %963 = vmatprep.subr.mxu0 0.0
    %964 = vmatpush1.xpose.msra.mxu0 0.0
    %965 = vmatprep.subr.mxu0 0.0
    %966 = vmatpush1.xpose.msra.mxu0 0.0
    %967 = vmatprep.subr.mxu0 0.0
    %968 = vmatpush1.xpose.msra.mxu0 0.0
    %969 = vmatprep.subr.mxu0 0.0
    %970 = vmatpush1.xpose.msra.mxu0 0.0
    %971 = vmatprep.subr.mxu0 0.0
    %972 = vmatpush1.xpose.msra.mxu0 0.0
    %973 = vmatprep.subr.mxu0 0.0
    %974 = vmatpush1.xpose.msra.mxu0 0.0
    %975 = vmatprep.subr.mxu0 0.0
    %976 = vmatpush1.xpose.msra.mxu0 0.0
    %977 = vmatprep.subr.mxu0 0.0
    %978 = vmatpush1.xpose.msra.mxu0 0.0
    %979 = vmatprep.subr.mxu0 0.0
    %980 = vmatpush1.xpose.msra.mxu0 0.0
    %981 = vmatprep.subr.mxu0 0.0
    %982 = vmatpush1.xpose.msra.mxu0 0.0
    %983 = vmatprep.subr.mxu0 0.0
    %984 = vmatpush1.xpose.msra.mxu0 0.0
    %985 = vmatprep.subr.mxu0 0.0
    %986 = vmatpush1.xpose.msra.mxu0 0.0
    %987 = vmatprep.subr.mxu0 0.0
    %988 = vmatpush1.xpose.msra.mxu0 0.0
    %989 = vmatprep.mubr.f32.mxu0 0.0
    %990 = vmatmul.mubr.f32.gmra.mrb[0].mxu0 %v909
    %v991 = vpop.f32.mrb[0].mxu0
    %v992 = vadd.f32 %v637, %v991
    %v993 = vpop.f32.mrb[0].mxu0
    %994 = vmatprep.mubr.f32.mxu0 0.0
    %995 = vmatmul.mubr.f32.gmra.mrb[0].mxu0 %v911
    %v996 = vpop.f32.mrb[0].mxu0
    %v997 = vadd.f32 %v638, %v996
    %v998 = vpop.f32.mrb[0].mxu0
    %999 = vmatprep.mubr.f32.mxu0 0.0
    %1000 = vmatmul.mubr.f32.gmra.mrb[0].mxu0 %v913
    %v1001 = vpop.f32.mrb[0].mxu0
    %v1002 = vadd.f32 %v639, %v1001
    %v1003 = vpop.f32.mrb[0].mxu0
    %1004 = vmatprep.mubr.f32.mxu0 0.0
    %1005 = vmatmul.mubr.f32.gmra.mrb[0].mxu0 %v915
    %v1006 = vpop.f32.mrb[0].mxu0
    %v1007 = vadd.f32 %v640, %v1006
    %v1008 = vpop.f32.mrb[0].mxu0
    %1009 = vdwg.mxu0
    %v1010 = vsel %vm751, %v992, -inf
    %1011 = vmax.xlane.f32.xlu0 %v1010
    %v1012 = vpop.xlane.xlu0 %1011
    %v1013 = vsel %vm751, %v997, -inf
    %1014 = vmax.xlane.f32.xlu0 %v1013
    %v1015 = vpop.xlane.xlu0 %1014
    %v1016 = vsel %vm751, %v1002, -inf
    %1017 = vmax.xlane.f32.xlu0 %v1016
    %v1018 = vpop.xlane.xlu0 %1017
    %v1019 = vsel %vm751, %v1007, -inf
    %1020 = vmax.xlane.f32.xlu0 %v1019
    %v1021 = vpop.xlane.xlu0 %1020
    %v1022 = vsub.f32 %v992, %v1012
    %v1023 = vsub.f32 %v997, %v1015
    %v1024 = vsub.f32 %v1002, %v1018
    %v1025 = vsub.f32 %v1007, %v1021
    %v1026 = vmul.f32 %v1022, 1.442695
    %v1027 = vpow.pop %v1026
    %v1028 = vmul.f32 %v1023, 1.442695
    %v1029 = vpow.pop %v1028
    %v1030 = vmul.f32 %v1024, 1.442695
    %v1031 = vpow.pop %v1030
    %v1032 = vmul.f32 %v1025, 1.442695
    %v1033 = vpow.pop %v1032
    %v1034 = vsel %vm751, %v1027, 0.0
    %1035 = vadd.xlane.f32.xlu0 %v1034
    %v1036 = vpop.xlane.xlu0 %1035
    %v1037 = vsel %vm751, %v1029, 0.0
    %1038 = vadd.xlane.f32.xlu0 %v1037
    %v1039 = vpop.xlane.xlu0 %1038
    %v1040 = vsel %vm751, %v1031, 0.0
    %1041 = vadd.xlane.f32.xlu0 %v1040
    %v1042 = vpop.xlane.xlu0 %1041
    %v1043 = vsel %vm751, %v1033, 0.0
    %1044 = vadd.xlane.f32.xlu0 %v1043
    %v1045 = vpop.xlane.xlu0 %1044
    %v1046 = vrcp.pop %v1036
    %v1047 = vrcp.pop %v1039
    %v1048 = vrcp.pop %v1042
    %v1049 = vrcp.pop %v1045
    %1054 = vrot.lane.b32.xlu0 %v591, 64
    %v1055 = vpop.permute.xlu0 %1054
    %1056 = vrot.lane.b32.xlu0 %v597, 64
    %v1057 = vpop.permute.xlu0 %1056
    %1058 = vrot.lane.b32.xlu0 %v603, 64
    %v1059 = vpop.permute.xlu0 %1058
    %1060 = vrot.lane.b32.xlu0 %v609, 64
    %v1061 = vpop.permute.xlu0 %1060
    %v1067 = vsel %vm751, %v1027, 0
    %v1070 = vsel %vm751, %v1029, 0
    %v1073 = vsel %vm751, %v1031, 0
    %v1076 = vsel %vm751, %v1033, 0
    %1078 = vmatprep.subr.mxu0 0.0
    %1079 = vmatpush1.msra.mxu0 %v1055
    %1080 = vmatprep.subr.mxu0 0.0
    %1081 = vmatpush1.msra.mxu0 %v1057
    %1082 = vmatprep.subr.mxu0 0.0
    %1083 = vmatpush1.msra.mxu0 %v1059
    %1084 = vmatprep.subr.mxu0 0.0
    %1085 = vmatpush1.msra.mxu0 %v1061
    %1086 = vmatprep.subr.mxu0 0.0
    %1087 = vmatpush1.msra.mxu0 0.0
    %1088 = vmatprep.subr.mxu0 0.0
    %1089 = vmatpush1.msra.mxu0 0.0
    %1090 = vmatprep.subr.mxu0 0.0
    %1091 = vmatpush1.msra.mxu0 0.0
    %1092 = vmatprep.subr.mxu0 0.0
    %1093 = vmatpush1.msra.mxu0 0.0
    %1094 = vmatprep.subr.mxu0 0.0
    %1095 = vmatpush1.msra.mxu0 0.0
    %1096 = vmatprep.subr.mxu0 0.0
    %1097 = vmatpush1.msra.mxu0 0.0
    %1098 = vmatprep.subr.mxu0 0.0
    %1099 = vmatpush1.msra.mxu0 0.0
    %1100 = vmatprep.subr.mxu0 0.0
    %1101 = vmatpush1.msra.mxu0 0.0
    %1102 = vmatprep.subr.mxu0 0.0
    %1103 = vmatpush1.msra.mxu0 0.0
    %1104 = vmatprep.subr.mxu0 0.0
    %1105 = vmatpush1.msra.mxu0 0.0
    %1106 = vmatprep.subr.mxu0 0.0
    %1107 = vmatpush1.msra.mxu0 0.0
    %1108 = vmatprep.subr.mxu0 0.0
    %1109 = vmatpush1.msra.mxu0 0.0
    %1110 = vmatprep.subr.mxu0 0.0
    %1111 = vmatpush1.msra.mxu0 0.0
    %1112 = vmatprep.subr.mxu0 0.0
    %1113 = vmatpush1.msra.mxu0 0.0
    %1114 = vmatprep.subr.mxu0 0.0
    %1115 = vmatpush1.msra.mxu0 0.0
    %1116 = vmatprep.subr.mxu0 0.0
    %1117 = vmatpush1.msra.mxu0 0.0
    %1118 = vmatprep.subr.mxu0 0.0
    %1119 = vmatpush1.msra.mxu0 0.0
    %1120 = vmatprep.subr.mxu0 0.0
    %1121 = vmatpush1.msra.mxu0 0.0
    %1122 = vmatprep.subr.mxu0 0.0
    %1123 = vmatpush1.msra.mxu0 0.0
    %1124 = vmatprep.subr.mxu0 0.0
    %1125 = vmatpush1.msra.mxu0 0.0
    %1126 = vmatprep.subr.mxu0 0.0
    %1127 = vmatpush1.msra.mxu0 0.0
    %1128 = vmatprep.subr.mxu0 0.0
    %1129 = vmatpush1.msra.mxu0 0.0
    %1130 = vmatprep.subr.mxu0 0.0
    %1131 = vmatpush1.msra.mxu0 0.0
    %1132 = vmatprep.subr.mxu0 0.0
    %1133 = vmatpush1.msra.mxu0 0.0
    %1134 = vmatprep.subr.mxu0 0.0
    %1135 = vmatpush1.msra.mxu0 0.0
    %1136 = vmatprep.subr.mxu0 0.0
    %1137 = vmatpush1.msra.mxu0 0.0
    %1138 = vmatprep.subr.mxu0 0.0
    %1139 = vmatpush1.msra.mxu0 0.0
    %1140 = vmatprep.subr.mxu0 0.0
    %1141 = vmatpush1.msra.mxu0 0.0
    %1142 = vmatprep.mubr.f32.mxu0 0.0
    %1143 = vmatmul.mubr.f32.gmra.mrb[0].mxu0 %v1067
    %v1144 = vpop.f32.mrb[0].mxu0
    %v1145 = vadd.f32 0.0, %v1144
    %v1146 = vpop.f32.mrb[0].mxu0
    %1147 = vmatprep.mubr.f32.mxu0 0.0
    %1148 = vmatmul.mubr.f32.gmra.mrb[0].mxu0 %v1070
    %v1149 = vpop.f32.mrb[0].mxu0
    %v1150 = vadd.f32 0.0, %v1149
    %v1151 = vpop.f32.mrb[0].mxu0
    %1152 = vmatprep.mubr.f32.mxu0 0.0
    %1153 = vmatmul.mubr.f32.gmra.mrb[0].mxu0 %v1073
    %v1154 = vpop.f32.mrb[0].mxu0
    %v1155 = vadd.f32 0.0, %v1154
    %v1156 = vpop.f32.mrb[0].mxu0
    %1157 = vmatprep.mubr.f32.mxu0 0.0
    %1158 = vmatmul.mubr.f32.gmra.mrb[0].mxu0 %v1076
    %v1159 = vpop.f32.mrb[0].mxu0
    %v1160 = vadd.f32 0.0, %v1159
    %v1161 = vpop.f32.mrb[0].mxu0
    %1162 = vdwg.mxu0
    %v1163 = vmul.f32 %v1145, %v1046
    %v1164 = vmul.f32 %v1150, %v1047
    %v1165 = vmul.f32 %v1155, %v1048
    %v1166 = vmul.f32 %v1160, %v1049
    %v1168 = vsel %vm641, %v367, 0
    %v1171 = vsel %vm641, %v373, 0
    %v1174 = vsel %vm641, %v379, 0
    %v1177 = vsel %vm641, %v385, 0
    %v1180 = vsel %vm641, %v480, 0
    %v1183 = vsel %vm641, %v486, 0
    %v1186 = vsel %vm641, %v492, 0
    %v1189 = vsel %vm641, %v498, 0
    %1191 = vmatprep.subr.mxu0 0.0
    %1192 = vmatpush1.xpose.msra.mxu0 %v1180
    %1193 = vmatprep.subr.mxu0 0.0
    %1194 = vmatpush1.xpose.msra.mxu0 %v1183
    %1195 = vmatprep.subr.mxu0 0.0
    %1196 = vmatpush1.xpose.msra.mxu0 %v1186
    %1197 = vmatprep.subr.mxu0 0.0
    %1198 = vmatpush1.xpose.msra.mxu0 %v1189
    %1199 = vmatprep.subr.mxu0 0.0
    %1200 = vmatpush1.xpose.msra.mxu0 0.0
    %1201 = vmatprep.subr.mxu0 0.0
    %1202 = vmatpush1.xpose.msra.mxu0 0.0
    %1203 = vmatprep.subr.mxu0 0.0
    %1204 = vmatpush1.xpose.msra.mxu0 0.0
    %1205 = vmatprep.subr.mxu0 0.0
    %1206 = vmatpush1.xpose.msra.mxu0 0.0
    %1207 = vmatprep.subr.mxu0 0.0
    %1208 = vmatpush1.xpose.msra.mxu0 0.0
    %1209 = vmatprep.subr.mxu0 0.0
    %1210 = vmatpush1.xpose.msra.mxu0 0.0
    %1211 = vmatprep.subr.mxu0 0.0
    %1212 = vmatpush1.xpose.msra.mxu0 0.0
    %1213 = vmatprep.subr.mxu0 0.0
    %1214 = vmatpush1.xpose.msra.mxu0 0.0
    %1215 = vmatprep.subr.mxu0 0.0
    %1216 = vmatpush1.xpose.msra.mxu0 0.0
    %1217 = vmatprep.subr.mxu0 0.0
    %1218 = vmatpush1.xpose.msra.mxu0 0.0
    %1219 = vmatprep.subr.mxu0 0.0
    %1220 = vmatpush1.xpose.msra.mxu0 0.0
    %1221 = vmatprep.subr.mxu0 0.0
    %1222 = vmatpush1.xpose.msra.mxu0 0.0
    %1223 = vmatprep.subr.mxu0 0.0
    %1224 = vmatpush1.xpose.msra.mxu0 0.0
    %1225 = vmatprep.subr.mxu0 0.0
    %1226 = vmatpush1.xpose.msra.mxu0 0.0
    %1227 = vmatprep.subr.mxu0 0.0
    %1228 = vmatpush1.xpose.msra.mxu0 0.0
    %1229 = vmatprep.subr.mxu0 0.0
    %1230 = vmatpush1.xpose.msra.mxu0 0.0
    %1231 = vmatprep.subr.mxu0 0.0
    %1232 = vmatpush1.xpose.msra.mxu0 0.0
    %1233 = vmatprep.subr.mxu0 0.0
    %1234 = vmatpush1.xpose.msra.mxu0 0.0
    %1235 = vmatprep.subr.mxu0 0.0
    %1236 = vmatpush1.xpose.msra.mxu0 0.0
    %1237 = vmatprep.subr.mxu0 0.0
    %1238 = vmatpush1.xpose.msra.mxu0 0.0
    %1239 = vmatprep.subr.mxu0 0.0
    %1240 = vmatpush1.xpose.msra.mxu0 0.0
    %1241 = vmatprep.subr.mxu0 0.0
    %1242 = vmatpush1.xpose.msra.mxu0 0.0
    %1243 = vmatprep.subr.mxu0 0.0
    %1244 = vmatpush1.xpose.msra.mxu0 0.0
    %1245 = vmatprep.subr.mxu0 0.0
    %1246 = vmatpush1.xpose.msra.mxu0 0.0
    %1247 = vmatprep.subr.mxu0 0.0
    %1248 = vmatpush1.xpose.msra.mxu0 0.0
    %1249 = vmatprep.subr.mxu0 0.0
    %1250 = vmatpush1.xpose.msra.mxu0 0.0
    %1251 = vmatprep.subr.mxu0 0.0
    %1252 = vmatpush1.xpose.msra.mxu0 0.0
    %1253 = vmatprep.subr.mxu0 0.0
    %1254 = vmatpush1.xpose.msra.mxu0 0.0
    %1255 = vmatprep.mubr.f32.mxu0 0.0
    %1256 = vmatmul.mubr.f32.gmra.mrb[0].mxu0 %v1168
    %v1257 = vpop.f32.mrb[0].mxu0
    %v1258 = vadd.f32 %v637, %v1257
    %v1259 = vpop.f32.mrb[0].mxu0
    %1260 = vmatprep.mubr.f32.mxu0 0.0
    %1261 = vmatmul.mubr.f32.gmra.mrb[0].mxu0 %v1171
    %v1262 = vpop.f32.mrb[0].mxu0
    %v1263 = vadd.f32 %v638, %v1262
    %v1264 = vpop.f32.mrb[0].mxu0
    %1265 = vmatprep.mubr.f32.mxu0 0.0
    %1266 = vmatmul.mubr.f32.gmra.mrb[0].mxu0 %v1174
    %v1267 = vpop.f32.mrb[0].mxu0
    %v1268 = vadd.f32 %v639, %v1267
    %v1269 = vpop.f32.mrb[0].mxu0
    %1270 = vmatprep.mubr.f32.mxu0 0.0
    %1271 = vmatmul.mubr.f32.gmra.mrb[0].mxu0 %v1177
    %v1272 = vpop.f32.mrb[0].mxu0
    %v1273 = vadd.f32 %v640, %v1272
    %v1274 = vpop.f32.mrb[0].mxu0
    %1275 = vdwg.mxu0
    %v1276 = vsel %vm751, %v1258, -inf
    %1277 = vmax.xlane.f32.xlu0 %v1276
    %v1278 = vpop.xlane.xlu0 %1277
    %v1279 = vsel %vm751, %v1263, -inf
    %1280 = vmax.xlane.f32.xlu0 %v1279
    %v1281 = vpop.xlane.xlu0 %1280
    %v1282 = vsel %vm751, %v1268, -inf
    %1283 = vmax.xlane.f32.xlu0 %v1282
    %v1284 = vpop.xlane.xlu0 %1283
    %v1285 = vsel %vm751, %v1273, -inf
    %1286 = vmax.xlane.f32.xlu0 %v1285
    %v1287 = vpop.xlane.xlu0 %1286
    %v1288 = vsub.f32 %v1258, %v1278
    %v1289 = vsub.f32 %v1263, %v1281
    %v1290 = vsub.f32 %v1268, %v1284
    %v1291 = vsub.f32 %v1273, %v1287
    %v1292 = vmul.f32 %v1288, 1.442695
    %v1293 = vpow.pop %v1292
    %v1294 = vmul.f32 %v1289, 1.442695
    %v1295 = vpow.pop %v1294
    %v1296 = vmul.f32 %v1290, 1.442695
    %v1297 = vpow.pop %v1296
    %v1298 = vmul.f32 %v1291, 1.442695
    %v1299 = vpow.pop %v1298
    %v1300 = vsel %vm751, %v1293, 0.0
    %1301 = vadd.xlane.f32.xlu0 %v1300
    %v1302 = vpop.xlane.xlu0 %1301
    %v1303 = vsel %vm751, %v1295, 0.0
    %1304 = vadd.xlane.f32.xlu0 %v1303
    %v1305 = vpop.xlane.xlu0 %1304
    %v1306 = vsel %vm751, %v1297, 0.0
    %1307 = vadd.xlane.f32.xlu0 %v1306
    %v1308 = vpop.xlane.xlu0 %1307
    %v1309 = vsel %vm751, %v1299, 0.0
    %1310 = vadd.xlane.f32.xlu0 %v1309
    %v1311 = vpop.xlane.xlu0 %1310
    %v1312 = vrcp.pop %v1302
    %v1313 = vrcp.pop %v1305
    %v1314 = vrcp.pop %v1308
    %v1315 = vrcp.pop %v1311
    %v1317 = vsel %vm751, %v1293, 0
    %v1320 = vsel %vm751, %v1295, 0
    %v1323 = vsel %vm751, %v1297, 0
    %v1326 = vsel %vm751, %v1299, 0
    %1328 = vmatprep.subr.mxu0 0.0
    %1329 = vmatpush1.msra.mxu0 %v593
    %1330 = vmatprep.subr.mxu0 0.0
    %1331 = vmatpush1.msra.mxu0 %v599
    %1332 = vmatprep.subr.mxu0 0.0
    %1333 = vmatpush1.msra.mxu0 %v605
    %1334 = vmatprep.subr.mxu0 0.0
    %1335 = vmatpush1.msra.mxu0 %v611
    %1336 = vmatprep.subr.mxu0 0.0
    %1337 = vmatpush1.msra.mxu0 0.0
    %1338 = vmatprep.subr.mxu0 0.0
    %1339 = vmatpush1.msra.mxu0 0.0
    %1340 = vmatprep.subr.mxu0 0.0
    %1341 = vmatpush1.msra.mxu0 0.0
    %1342 = vmatprep.subr.mxu0 0.0
    %1343 = vmatpush1.msra.mxu0 0.0
    %1344 = vmatprep.subr.mxu0 0.0
    %1345 = vmatpush1.msra.mxu0 0.0
    %1346 = vmatprep.subr.mxu0 0.0
    %1347 = vmatpush1.msra.mxu0 0.0
    %1348 = vmatprep.subr.mxu0 0.0
    %1349 = vmatpush1.msra.mxu0 0.0
    %1350 = vmatprep.subr.mxu0 0.0
    %1351 = vmatpush1.msra.mxu0 0.0
    %1352 = vmatprep.subr.mxu0 0.0
    %1353 = vmatpush1.msra.mxu0 0.0
    %1354 = vmatprep.subr.mxu0 0.0
    %1355 = vmatpush1.msra.mxu0 0.0
    %1356 = vmatprep.subr.mxu0 0.0
    %1357 = vmatpush1.msra.mxu0 0.0
    %1358 = vmatprep.subr.mxu0 0.0
    %1359 = vmatpush1.msra.mxu0 0.0
    %1360 = vmatprep.subr.mxu0 0.0
    %1361 = vmatpush1.msra.mxu0 0.0
    %1362 = vmatprep.subr.mxu0 0.0
    %1363 = vmatpush1.msra.mxu0 0.0
    %1364 = vmatprep.subr.mxu0 0.0
    %1365 = vmatpush1.msra.mxu0 0.0
    %1366 = vmatprep.subr.mxu0 0.0
    %1367 = vmatpush1.msra.mxu0 0.0
    %1368 = vmatprep.subr.mxu0 0.0
    %1369 = vmatpush1.msra.mxu0 0.0
    %1370 = vmatprep.subr.mxu0 0.0
    %1371 = vmatpush1.msra.mxu0 0.0
    %1372 = vmatprep.subr.mxu0 0.0
    %1373 = vmatpush1.msra.mxu0 0.0
    %1374 = vmatprep.subr.mxu0 0.0
    %1375 = vmatpush1.msra.mxu0 0.0
    %1376 = vmatprep.subr.mxu0 0.0
    %1377 = vmatpush1.msra.mxu0 0.0
    %1378 = vmatprep.subr.mxu0 0.0
    %1379 = vmatpush1.msra.mxu0 0.0
    %1380 = vmatprep.subr.mxu0 0.0
    %1381 = vmatpush1.msra.mxu0 0.0
    %1382 = vmatprep.subr.mxu0 0.0
    %1383 = vmatpush1.msra.mxu0 0.0
    %1384 = vmatprep.subr.mxu0 0.0
    %1385 = vmatpush1.msra.mxu0 0.0
    %1386 = vmatprep.subr.mxu0 0.0
    %1387 = vmatpush1.msra.mxu0 0.0
    %1388 = vmatprep.subr.mxu0 0.0
    %1389 = vmatpush1.msra.mxu0 0.0
    %1390 = vmatprep.subr.mxu0 0.0
    %1391 = vmatpush1.msra.mxu0 0.0
    %1392 = vmatprep.mubr.f32.mxu0 0.0
    %1393 = vmatmul.mubr.f32.gmra.mrb[0].mxu0 %v1317
    %v1394 = vpop.f32.mrb[0].mxu0
    %v1395 = vadd.f32 0.0, %v1394
    %v1396 = vpop.f32.mrb[0].mxu0
    %1397 = vmatprep.mubr.f32.mxu0 0.0
    %1398 = vmatmul.mubr.f32.gmra.mrb[0].mxu0 %v1320
    %v1399 = vpop.f32.mrb[0].mxu0
    %v1400 = vadd.f32 0.0, %v1399
    %v1401 = vpop.f32.mrb[0].mxu0
    %1402 = vmatprep.mubr.f32.mxu0 0.0
    %1403 = vmatmul.mubr.f32.gmra.mrb[0].mxu0 %v1323
    %v1404 = vpop.f32.mrb[0].mxu0
    %v1405 = vadd.f32 0.0, %v1404
    %v1406 = vpop.f32.mrb[0].mxu0
    %1407 = vmatprep.mubr.f32.mxu0 0.0
    %1408 = vmatmul.mubr.f32.gmra.mrb[0].mxu0 %v1326
    %v1409 = vpop.f32.mrb[0].mxu0
    %v1410 = vadd.f32 0.0, %v1409
    %v1411 = vpop.f32.mrb[0].mxu0
    %1412 = vdwg.mxu0
    %v1413 = vmul.f32 %v1395, %v1312
    %v1414 = vmul.f32 %v1400, %v1313
    %v1415 = vmul.f32 %v1405, %v1314
    %v1416 = vmul.f32 %v1410, %v1315
    %1417 = vrot.lane.b32.xlu0 %v367, 64
    %v1418 = vpop.permute.xlu0 %1417
    %1419 = vrot.lane.b32.xlu0 %v373, 64
    %v1420 = vpop.permute.xlu0 %1419
    %1421 = vrot.lane.b32.xlu0 %v379, 64
    %v1422 = vpop.permute.xlu0 %1421
    %1423 = vrot.lane.b32.xlu0 %v385, 64
    %v1424 = vpop.permute.xlu0 %1423
    %1425 = vrot.lane.b32.xlu0 %v480, 64
    %v1426 = vpop.permute.xlu0 %1425
    %1427 = vrot.lane.b32.xlu0 %v486, 64
    %v1428 = vpop.permute.xlu0 %1427
    %1429 = vrot.lane.b32.xlu0 %v492, 64
    %v1430 = vpop.permute.xlu0 %1429
    %1431 = vrot.lane.b32.xlu0 %v498, 64
    %v1432 = vpop.permute.xlu0 %1431
    %v1433 = vsel %vm641, %v1418, 0
    %v1435 = vsel %vm641, %v1420, 0
    %v1437 = vsel %vm641, %v1422, 0
    %v1439 = vsel %vm641, %v1424, 0
    %v1441 = vsel %vm641, %v1426, 0
    %v1443 = vsel %vm641, %v1428, 0
    %v1445 = vsel %vm641, %v1430, 0
    %v1447 = vsel %vm641, %v1432, 0
    %1449 = vmatprep.subr.mxu0 0.0
    %1450 = vmatpush1.xpose.msra.mxu0 %v1441
    %1451 = vmatprep.subr.mxu0 0.0
    %1452 = vmatpush1.xpose.msra.mxu0 %v1443
    %1453 = vmatprep.subr.mxu0 0.0
    %1454 = vmatpush1.xpose.msra.mxu0 %v1445
    %1455 = vmatprep.subr.mxu0 0.0
    %1456 = vmatpush1.xpose.msra.mxu0 %v1447
    %1457 = vmatprep.subr.mxu0 0.0
    %1458 = vmatpush1.xpose.msra.mxu0 0.0
    %1459 = vmatprep.subr.mxu0 0.0
    %1460 = vmatpush1.xpose.msra.mxu0 0.0
    %1461 = vmatprep.subr.mxu0 0.0
    %1462 = vmatpush1.xpose.msra.mxu0 0.0
    %1463 = vmatprep.subr.mxu0 0.0
    %1464 = vmatpush1.xpose.msra.mxu0 0.0
    %1465 = vmatprep.subr.mxu0 0.0
    %1466 = vmatpush1.xpose.msra.mxu0 0.0
    %1467 = vmatprep.subr.mxu0 0.0
    %1468 = vmatpush1.xpose.msra.mxu0 0.0
    %1469 = vmatprep.subr.mxu0 0.0
    %1470 = vmatpush1.xpose.msra.mxu0 0.0
    %1471 = vmatprep.subr.mxu0 0.0
    %1472 = vmatpush1.xpose.msra.mxu0 0.0
    %1473 = vmatprep.subr.mxu0 0.0
    %1474 = vmatpush1.xpose.msra.mxu0 0.0
    %1475 = vmatprep.subr.mxu0 0.0
    %1476 = vmatpush1.xpose.msra.mxu0 0.0
    %1477 = vmatprep.subr.mxu0 0.0
    %1478 = vmatpush1.xpose.msra.mxu0 0.0
    %1479 = vmatprep.subr.mxu0 0.0
    %1480 = vmatpush1.xpose.msra.mxu0 0.0
    %1481 = vmatprep.subr.mxu0 0.0
    %1482 = vmatpush1.xpose.msra.mxu0 0.0
    %1483 = vmatprep.subr.mxu0 0.0
    %1484 = vmatpush1.xpose.msra.mxu0 0.0
    %1485 = vmatprep.subr.mxu0 0.0
    %1486 = vmatpush1.xpose.msra.mxu0 0.0
    %1487 = vmatprep.subr.mxu0 0.0
    %1488 = vmatpush1.xpose.msra.mxu0 0.0
    %1489 = vmatprep.subr.mxu0 0.0
    %1490 = vmatpush1.xpose.msra.mxu0 0.0
    %1491 = vmatprep.subr.mxu0 0.0
    %1492 = vmatpush1.xpose.msra.mxu0 0.0
    %1493 = vmatprep.subr.mxu0 0.0
    %1494 = vmatpush1.xpose.msra.mxu0 0.0
    %1495 = vmatprep.subr.mxu0 0.0
    %1496 = vmatpush1.xpose.msra.mxu0 0.0
    %1497 = vmatprep.subr.mxu0 0.0
    %1498 = vmatpush1.xpose.msra.mxu0 0.0
    %1499 = vmatprep.subr.mxu0 0.0
    %1500 = vmatpush1.xpose.msra.mxu0 0.0
    %1501 = vmatprep.subr.mxu0 0.0
    %1502 = vmatpush1.xpose.msra.mxu0 0.0
    %1503 = vmatprep.subr.mxu0 0.0
    %1504 = vmatpush1.xpose.msra.mxu0 0.0
    %1505 = vmatprep.subr.mxu0 0.0
    %1506 = vmatpush1.xpose.msra.mxu0 0.0
    %1507 = vmatprep.subr.mxu0 0.0
    %1508 = vmatpush1.xpose.msra.mxu0 0.0
    %1509 = vmatprep.subr.mxu0 0.0
    %1510 = vmatpush1.xpose.msra.mxu0 0.0
    %1511 = vmatprep.subr.mxu0 0.0
    %1512 = vmatpush1.xpose.msra.mxu0 0.0
    %1513 = vmatprep.mubr.f32.mxu0 0.0
    %1514 = vmatmul.mubr.f32.gmra.mrb[0].mxu0 %v1433
    %v1515 = vpop.f32.mrb[0].mxu0
    %v1516 = vadd.f32 %v637, %v1515
    %v1517 = vpop.f32.mrb[0].mxu0
    %1518 = vmatprep.mubr.f32.mxu0 0.0
    %1519 = vmatmul.mubr.f32.gmra.mrb[0].mxu0 %v1435
    %v1520 = vpop.f32.mrb[0].mxu0
    %v1521 = vadd.f32 %v638, %v1520
    %v1522 = vpop.f32.mrb[0].mxu0
    %1523 = vmatprep.mubr.f32.mxu0 0.0
    %1524 = vmatmul.mubr.f32.gmra.mrb[0].mxu0 %v1437
    %v1525 = vpop.f32.mrb[0].mxu0
    %v1526 = vadd.f32 %v639, %v1525
    %v1527 = vpop.f32.mrb[0].mxu0
    %1528 = vmatprep.mubr.f32.mxu0 0.0
    %1529 = vmatmul.mubr.f32.gmra.mrb[0].mxu0 %v1439
    %v1530 = vpop.f32.mrb[0].mxu0
    %v1531 = vadd.f32 %v640, %v1530
    %v1532 = vpop.f32.mrb[0].mxu0
    %1533 = vdwg.mxu0
    %v1534 = vsel %vm751, %v1516, -inf
    %1535 = vmax.xlane.f32.xlu0 %v1534
    %v1536 = vpop.xlane.xlu0 %1535
    %v1537 = vsel %vm751, %v1521, -inf
    %1538 = vmax.xlane.f32.xlu0 %v1537
    %v1539 = vpop.xlane.xlu0 %1538
    %v1540 = vsel %vm751, %v1526, -inf
    %1541 = vmax.xlane.f32.xlu0 %v1540
    %v1542 = vpop.xlane.xlu0 %1541
    %v1543 = vsel %vm751, %v1531, -inf
    %1544 = vmax.xlane.f32.xlu0 %v1543
    %v1545 = vpop.xlane.xlu0 %1544
    %v1546 = vsub.f32 %v1516, %v1536
    %v1547 = vsub.f32 %v1521, %v1539
    %v1548 = vsub.f32 %v1526, %v1542
    %v1549 = vsub.f32 %v1531, %v1545
    %v1550 = vmul.f32 %v1546, 1.442695
    %v1551 = vpow.pop %v1550
    %v1552 = vmul.f32 %v1547, 1.442695
    %v1553 = vpow.pop %v1552
    %v1554 = vmul.f32 %v1548, 1.442695
    %v1555 = vpow.pop %v1554
    %v1556 = vmul.f32 %v1549, 1.442695
    %v1557 = vpow.pop %v1556
    %v1558 = vsel %vm751, %v1551, 0.0
    %1559 = vadd.xlane.f32.xlu0 %v1558
    %v1560 = vpop.xlane.xlu0 %1559
    %v1561 = vsel %vm751, %v1553, 0.0
    %1562 = vadd.xlane.f32.xlu0 %v1561
    %v1563 = vpop.xlane.xlu0 %1562
    %v1564 = vsel %vm751, %v1555, 0.0
    %1565 = vadd.xlane.f32.xlu0 %v1564
    %v1566 = vpop.xlane.xlu0 %1565
    %v1567 = vsel %vm751, %v1557, 0.0
    %1568 = vadd.xlane.f32.xlu0 %v1567
    %v1569 = vpop.xlane.xlu0 %1568
    %v1570 = vrcp.pop %v1560
    %v1571 = vrcp.pop %v1563
    %v1572 = vrcp.pop %v1566
    %v1573 = vrcp.pop %v1569
    %1578 = vrot.lane.b32.xlu0 %v593, 64
    %v1579 = vpop.permute.xlu0 %1578
    %1580 = vrot.lane.b32.xlu0 %v599, 64
    %v1581 = vpop.permute.xlu0 %1580
    %1582 = vrot.lane.b32.xlu0 %v605, 64
    %v1583 = vpop.permute.xlu0 %1582
    %1584 = vrot.lane.b32.xlu0 %v611, 64
    %v1585 = vpop.permute.xlu0 %1584
    %v1591 = vsel %vm751, %v1551, 0
    %v1594 = vsel %vm751, %v1553, 0
    %v1597 = vsel %vm751, %v1555, 0
    %v1600 = vsel %vm751, %v1557, 0
    %1602 = vmatprep.subr.mxu0 0.0
    %1603 = vmatpush1.msra.mxu0 %v1579
    %1604 = vmatprep.subr.mxu0 0.0
    %1605 = vmatpush1.msra.mxu0 %v1581
    %1606 = vmatprep.subr.mxu0 0.0
    %1607 = vmatpush1.msra.mxu0 %v1583
    %1608 = vmatprep.subr.mxu0 0.0
    %1609 = vmatpush1.msra.mxu0 %v1585
    %1610 = vmatprep.subr.mxu0 0.0
    %1611 = vmatpush1.msra.mxu0 0.0
    %1612 = vmatprep.subr.mxu0 0.0
    %1613 = vmatpush1.msra.mxu0 0.0
    %1614 = vmatprep.subr.mxu0 0.0
    %1615 = vmatpush1.msra.mxu0 0.0
    %1616 = vmatprep.subr.mxu0 0.0
    %1617 = vmatpush1.msra.mxu0 0.0
    %1618 = vmatprep.subr.mxu0 0.0
    %1619 = vmatpush1.msra.mxu0 0.0
    %1620 = vmatprep.subr.mxu0 0.0
    %1621 = vmatpush1.msra.mxu0 0.0
    %1622 = vmatprep.subr.mxu0 0.0
    %1623 = vmatpush1.msra.mxu0 0.0
    %1624 = vmatprep.subr.mxu0 0.0
    %1625 = vmatpush1.msra.mxu0 0.0
    %1626 = vmatprep.subr.mxu0 0.0
    %1627 = vmatpush1.msra.mxu0 0.0
    %1628 = vmatprep.subr.mxu0 0.0
    %1629 = vmatpush1.msra.mxu0 0.0
    %1630 = vmatprep.subr.mxu0 0.0
    %1631 = vmatpush1.msra.mxu0 0.0
    %1632 = vmatprep.subr.mxu0 0.0
    %1633 = vmatpush1.msra.mxu0 0.0
    %1634 = vmatprep.subr.mxu0 0.0
    %1635 = vmatpush1.msra.mxu0 0.0
    %1636 = vmatprep.subr.mxu0 0.0
    %1637 = vmatpush1.msra.mxu0 0.0
    %1638 = vmatprep.subr.mxu0 0.0
    %1639 = vmatpush1.msra.mxu0 0.0
    %1640 = vmatprep.subr.mxu0 0.0
    %1641 = vmatpush1.msra.mxu0 0.0
    %1642 = vmatprep.subr.mxu0 0.0
    %1643 = vmatpush1.msra.mxu0 0.0
    %1644 = vmatprep.subr.mxu0 0.0
    %1645 = vmatpush1.msra.mxu0 0.0
    %1646 = vmatprep.subr.mxu0 0.0
    %1647 = vmatpush1.msra.mxu0 0.0
    %1648 = vmatprep.subr.mxu0 0.0
    %1649 = vmatpush1.msra.mxu0 0.0
    %1650 = vmatprep.subr.mxu0 0.0
    %1651 = vmatpush1.msra.mxu0 0.0
    %1652 = vmatprep.subr.mxu0 0.0
    %1653 = vmatpush1.msra.mxu0 0.0
    %1654 = vmatprep.subr.mxu0 0.0
    %1655 = vmatpush1.msra.mxu0 0.0
    %1656 = vmatprep.subr.mxu0 0.0
    %1657 = vmatpush1.msra.mxu0 0.0
    %1658 = vmatprep.subr.mxu0 0.0
    %1659 = vmatpush1.msra.mxu0 0.0
    %1660 = vmatprep.subr.mxu0 0.0
    %1661 = vmatpush1.msra.mxu0 0.0
    %1662 = vmatprep.subr.mxu0 0.0
    %1663 = vmatpush1.msra.mxu0 0.0
    %1664 = vmatprep.subr.mxu0 0.0
    %1665 = vmatpush1.msra.mxu0 0.0
    %1666 = vmatprep.mubr.f32.mxu0 0.0
    %1667 = vmatmul.mubr.f32.gmra.mrb[0].mxu0 %v1591
    %v1668 = vpop.f32.mrb[0].mxu0
    %v1669 = vadd.f32 0.0, %v1668
    %v1670 = vpop.f32.mrb[0].mxu0
    %1671 = vmatprep.mubr.f32.mxu0 0.0
    %1672 = vmatmul.mubr.f32.gmra.mrb[0].mxu0 %v1594
    %v1673 = vpop.f32.mrb[0].mxu0
    %v1674 = vadd.f32 0.0, %v1673
    %v1675 = vpop.f32.mrb[0].mxu0
    %1676 = vmatprep.mubr.f32.mxu0 0.0
    %1677 = vmatmul.mubr.f32.gmra.mrb[0].mxu0 %v1597
    %v1678 = vpop.f32.mrb[0].mxu0
    %v1679 = vadd.f32 0.0, %v1678
    %v1680 = vpop.f32.mrb[0].mxu0
    %1681 = vmatprep.mubr.f32.mxu0 0.0
    %1682 = vmatmul.mubr.f32.gmra.mrb[0].mxu0 %v1600
    %v1683 = vpop.f32.mrb[0].mxu0
    %v1684 = vadd.f32 0.0, %v1683
    %v1685 = vpop.f32.mrb[0].mxu0
    %1686 = vdwg.mxu0
    %v1687 = vmul.f32 %v1669, %v1570
    %v1688 = vmul.f32 %v1674, %v1571
    %v1689 = vmul.f32 %v1679, %v1572
    %v1690 = vmul.f32 %v1684, %v1573
    %1695 = vrot.lane.b32.xlu0 %v1163, 64
    %v1696 = vpop.permute.xlu0 %1695
    %1697 = vrot.lane.b32.xlu0 %v1164, 64
    %v1698 = vpop.permute.xlu0 %1697
    %1699 = vrot.lane.b32.xlu0 %v1165, 64
    %v1700 = vpop.permute.xlu0 %1699
    %1701 = vrot.lane.b32.xlu0 %v1166, 64
    %v1702 = vpop.permute.xlu0 %1701
    %1711 = vrot.lane.b32.xlu0 %v1687, 64
    %v1712 = vpop.permute.xlu0 %1711
    %1713 = vrot.lane.b32.xlu0 %v1688, 64
    %v1714 = vpop.permute.xlu0 %1713
    %1715 = vrot.lane.b32.xlu0 %v1689, 64
    %v1716 = vpop.permute.xlu0 %1715
    %1717 = vrot.lane.b32.xlu0 %v1690, 64
    %v1718 = vpop.permute.xlu0 %1717
    %v1723 = vsel %vm641, %v889, %v1696
    %v1724 = vsel %vm641, %v890, %v1698
    %v1725 = vsel %vm641, %v891, %v1700
    %v1726 = vsel %vm641, %v892, %v1702
    %v1727 = vsel %vm641, %v1413, %v1712
    %v1728 = vsel %vm641, %v1414, %v1714
    %v1729 = vsel %vm641, %v1415, %v1716
    %v1730 = vsel %vm641, %v1416, %v1718
    %1731 = vst [vmem:[%s4] sm:$0xff] %v1723
    %1732 = vst [vmem:[%s4 + $0x8] sm:$0xff] %v1727
    %1733 = vst [vmem:[%s4 + $0x10] sm:$0xff] %v1724
    %1734 = vst [vmem:[%s4 + $0x18] sm:$0xff] %v1728
    %1735 = vst [vmem:[%s4 + $0x20] sm:$0xff] %v1725
    %1736 = vst [vmem:[%s4 + $0x28] sm:$0xff] %v1729
    %1737 = vst [vmem:[%s4 + $0x30] sm:$0xff] %v1726
    %1738 = vst [vmem:[%s4 + $0x38] sm:$0xff] %v1730
    %v1740 = vsel %vm641, %v389, 0
    %v1743 = vsel %vm641, %v395, 0
    %v1746 = vsel %vm641, %v401, 0
    %v1749 = vsel %vm641, %v407, 0
    %v1752 = vsel %vm641, %v502, 0
    %v1755 = vsel %vm641, %v508, 0
    %v1758 = vsel %vm641, %v514, 0
    %v1761 = vsel %vm641, %v520, 0
    %1763 = vmatprep.subr.mxu0 0.0
    %1764 = vmatpush1.xpose.msra.mxu0 %v1752
    %1765 = vmatprep.subr.mxu0 0.0
    %1766 = vmatpush1.xpose.msra.mxu0 %v1755
    %1767 = vmatprep.subr.mxu0 0.0
    %1768 = vmatpush1.xpose.msra.mxu0 %v1758
    %1769 = vmatprep.subr.mxu0 0.0
    %1770 = vmatpush1.xpose.msra.mxu0 %v1761
    %1771 = vmatprep.subr.mxu0 0.0
    %1772 = vmatpush1.xpose.msra.mxu0 0.0
    %1773 = vmatprep.subr.mxu0 0.0
    %1774 = vmatpush1.xpose.msra.mxu0 0.0
    %1775 = vmatprep.subr.mxu0 0.0
    %1776 = vmatpush1.xpose.msra.mxu0 0.0
    %1777 = vmatprep.subr.mxu0 0.0
    %1778 = vmatpush1.xpose.msra.mxu0 0.0
    %1779 = vmatprep.subr.mxu0 0.0
    %1780 = vmatpush1.xpose.msra.mxu0 0.0
    %1781 = vmatprep.subr.mxu0 0.0
    %1782 = vmatpush1.xpose.msra.mxu0 0.0
    %1783 = vmatprep.subr.mxu0 0.0
    %1784 = vmatpush1.xpose.msra.mxu0 0.0
    %1785 = vmatprep.subr.mxu0 0.0
    %1786 = vmatpush1.xpose.msra.mxu0 0.0
    %1787 = vmatprep.subr.mxu0 0.0
    %1788 = vmatpush1.xpose.msra.mxu0 0.0
    %1789 = vmatprep.subr.mxu0 0.0
    %1790 = vmatpush1.xpose.msra.mxu0 0.0
    %1791 = vmatprep.subr.mxu0 0.0
    %1792 = vmatpush1.xpose.msra.mxu0 0.0
    %1793 = vmatprep.subr.mxu0 0.0
    %1794 = vmatpush1.xpose.msra.mxu0 0.0
    %1795 = vmatprep.subr.mxu0 0.0
    %1796 = vmatpush1.xpose.msra.mxu0 0.0
    %1797 = vmatprep.subr.mxu0 0.0
    %1798 = vmatpush1.xpose.msra.mxu0 0.0
    %1799 = vmatprep.subr.mxu0 0.0
    %1800 = vmatpush1.xpose.msra.mxu0 0.0
    %1801 = vmatprep.subr.mxu0 0.0
    %1802 = vmatpush1.xpose.msra.mxu0 0.0
    %1803 = vmatprep.subr.mxu0 0.0
    %1804 = vmatpush1.xpose.msra.mxu0 0.0
    %1805 = vmatprep.subr.mxu0 0.0
    %1806 = vmatpush1.xpose.msra.mxu0 0.0
    %1807 = vmatprep.subr.mxu0 0.0
    %1808 = vmatpush1.xpose.msra.mxu0 0.0
    %1809 = vmatprep.subr.mxu0 0.0
    %1810 = vmatpush1.xpose.msra.mxu0 0.0
    %1811 = vmatprep.subr.mxu0 0.0
    %1812 = vmatpush1.xpose.msra.mxu0 0.0
    %1813 = vmatprep.subr.mxu0 0.0
    %1814 = vmatpush1.xpose.msra.mxu0 0.0
    %1815 = vmatprep.subr.mxu0 0.0
    %1816 = vmatpush1.xpose.msra.mxu0 0.0
    %1817 = vmatprep.subr.mxu0 0.0
    %1818 = vmatpush1.xpose.msra.mxu0 0.0
    %1819 = vmatprep.subr.mxu0 0.0
    %1820 = vmatpush1.xpose.msra.mxu0 0.0
    %1821 = vmatprep.subr.mxu0 0.0
    %1822 = vmatpush1.xpose.msra.mxu0 0.0
    %1823 = vmatprep.subr.mxu0 0.0
    %1824 = vmatpush1.xpose.msra.mxu0 0.0
    %1825 = vmatprep.subr.mxu0 0.0
    %1826 = vmatpush1.xpose.msra.mxu0 0.0
    %1827 = vmatprep.mubr.f32.mxu0 0.0
    %1828 = vmatmul.mubr.f32.gmra.mrb[0].mxu0 %v1740
    %v1829 = vpop.f32.mrb[0].mxu0
    %v1830 = vadd.f32 %v637, %v1829
    %v1831 = vpop.f32.mrb[0].mxu0
    %1832 = vmatprep.mubr.f32.mxu0 0.0
    %1833 = vmatmul.mubr.f32.gmra.mrb[0].mxu0 %v1743
    %v1834 = vpop.f32.mrb[0].mxu0
    %v1835 = vadd.f32 %v638, %v1834
    %v1836 = vpop.f32.mrb[0].mxu0
    %1837 = vmatprep.mubr.f32.mxu0 0.0
    %1838 = vmatmul.mubr.f32.gmra.mrb[0].mxu0 %v1746
    %v1839 = vpop.f32.mrb[0].mxu0
    %v1840 = vadd.f32 %v639, %v1839
    %v1841 = vpop.f32.mrb[0].mxu0
    %1842 = vmatprep.mubr.f32.mxu0 0.0
    %1843 = vmatmul.mubr.f32.gmra.mrb[0].mxu0 %v1749
    %v1844 = vpop.f32.mrb[0].mxu0
    %v1845 = vadd.f32 %v640, %v1844
    %v1846 = vpop.f32.mrb[0].mxu0
    %1847 = vdwg.mxu0
    %v1848 = vsel %vm751, %v1830, -inf
    %1849 = vmax.xlane.f32.xlu0 %v1848
    %v1850 = vpop.xlane.xlu0 %1849
    %v1851 = vsel %vm751, %v1835, -inf
    %1852 = vmax.xlane.f32.xlu0 %v1851
    %v1853 = vpop.xlane.xlu0 %1852
    %v1854 = vsel %vm751, %v1840, -inf
    %1855 = vmax.xlane.f32.xlu0 %v1854
    %v1856 = vpop.xlane.xlu0 %1855
    %v1857 = vsel %vm751, %v1845, -inf
    %1858 = vmax.xlane.f32.xlu0 %v1857
    %v1859 = vpop.xlane.xlu0 %1858
    %v1860 = vsub.f32 %v1830, %v1850
    %v1861 = vsub.f32 %v1835, %v1853
    %v1862 = vsub.f32 %v1840, %v1856
    %v1863 = vsub.f32 %v1845, %v1859
    %v1864 = vmul.f32 %v1860, 1.442695
    %v1865 = vpow.pop %v1864
    %v1866 = vmul.f32 %v1861, 1.442695
    %v1867 = vpow.pop %v1866
    %v1868 = vmul.f32 %v1862, 1.442695
    %v1869 = vpow.pop %v1868
    %v1870 = vmul.f32 %v1863, 1.442695
    %v1871 = vpow.pop %v1870
    %v1872 = vsel %vm751, %v1865, 0.0
    %1873 = vadd.xlane.f32.xlu0 %v1872
    %v1874 = vpop.xlane.xlu0 %1873
    %v1875 = vsel %vm751, %v1867, 0.0
    %1876 = vadd.xlane.f32.xlu0 %v1875
    %v1877 = vpop.xlane.xlu0 %1876
    %v1878 = vsel %vm751, %v1869, 0.0
    %1879 = vadd.xlane.f32.xlu0 %v1878
    %v1880 = vpop.xlane.xlu0 %1879
    %v1881 = vsel %vm751, %v1871, 0.0
    %1882 = vadd.xlane.f32.xlu0 %v1881
    %v1883 = vpop.xlane.xlu0 %1882
    %v1884 = vrcp.pop %v1874
    %v1885 = vrcp.pop %v1877
    %v1886 = vrcp.pop %v1880
    %v1887 = vrcp.pop %v1883
    %v1889 = vsel %vm751, %v1865, 0
    %v1892 = vsel %vm751, %v1867, 0
    %v1895 = vsel %vm751, %v1869, 0
    %v1898 = vsel %vm751, %v1871, 0
    %1900 = vmatprep.subr.mxu0 0.0
    %1901 = vmatpush1.msra.mxu0 %v615
    %1902 = vmatprep.subr.mxu0 0.0
    %1903 = vmatpush1.msra.mxu0 %v621
    %1904 = vmatprep.subr.mxu0 0.0
    %1905 = vmatpush1.msra.mxu0 %v627
    %1906 = vmatprep.subr.mxu0 0.0
    %1907 = vmatpush1.msra.mxu0 %v633
    %1908 = vmatprep.subr.mxu0 0.0
    %1909 = vmatpush1.msra.mxu0 0.0
    %1910 = vmatprep.subr.mxu0 0.0
    %1911 = vmatpush1.msra.mxu0 0.0
    %1912 = vmatprep.subr.mxu0 0.0
    %1913 = vmatpush1.msra.mxu0 0.0
    %1914 = vmatprep.subr.mxu0 0.0
    %1915 = vmatpush1.msra.mxu0 0.0
    %1916 = vmatprep.subr.mxu0 0.0
    %1917 = vmatpush1.msra.mxu0 0.0
    %1918 = vmatprep.subr.mxu0 0.0
    %1919 = vmatpush1.msra.mxu0 0.0
    %1920 = vmatprep.subr.mxu0 0.0
    %1921 = vmatpush1.msra.mxu0 0.0
    %1922 = vmatprep.subr.mxu0 0.0
    %1923 = vmatpush1.msra.mxu0 0.0
    %1924 = vmatprep.subr.mxu0 0.0
    %1925 = vmatpush1.msra.mxu0 0.0
    %1926 = vmatprep.subr.mxu0 0.0
    %1927 = vmatpush1.msra.mxu0 0.0
    %1928 = vmatprep.subr.mxu0 0.0
    %1929 = vmatpush1.msra.mxu0 0.0
    %1930 = vmatprep.subr.mxu0 0.0
    %1931 = vmatpush1.msra.mxu0 0.0
    %1932 = vmatprep.subr.mxu0 0.0
    %1933 = vmatpush1.msra.mxu0 0.0
    %1934 = vmatprep.subr.mxu0 0.0
    %1935 = vmatpush1.msra.mxu0 0.0
    %1936 = vmatprep.subr.mxu0 0.0
    %1937 = vmatpush1.msra.mxu0 0.0
    %1938 = vmatprep.subr.mxu0 0.0
    %1939 = vmatpush1.msra.mxu0 0.0
    %1940 = vmatprep.subr.mxu0 0.0
    %1941 = vmatpush1.msra.mxu0 0.0
    %1942 = vmatprep.subr.mxu0 0.0
    %1943 = vmatpush1.msra.mxu0 0.0
    %1944 = vmatprep.subr.mxu0 0.0
    %1945 = vmatpush1.msra.mxu0 0.0
    %1946 = vmatprep.subr.mxu0 0.0
    %1947 = vmatpush1.msra.mxu0 0.0
    %1948 = vmatprep.subr.mxu0 0.0
    %1949 = vmatpush1.msra.mxu0 0.0
    %1950 = vmatprep.subr.mxu0 0.0
    %1951 = vmatpush1.msra.mxu0 0.0
    %1952 = vmatprep.subr.mxu0 0.0
    %1953 = vmatpush1.msra.mxu0 0.0
    %1954 = vmatprep.subr.mxu0 0.0
    %1955 = vmatpush1.msra.mxu0 0.0
    %1956 = vmatprep.subr.mxu0 0.0
    %1957 = vmatpush1.msra.mxu0 0.0
    %1958 = vmatprep.subr.mxu0 0.0
    %1959 = vmatpush1.msra.mxu0 0.0
    %1960 = vmatprep.subr.mxu0 0.0
    %1961 = vmatpush1.msra.mxu0 0.0
    %1962 = vmatprep.subr.mxu0 0.0
    %1963 = vmatpush1.msra.mxu0 0.0
    %1964 = vmatprep.mubr.f32.mxu0 0.0
    %1965 = vmatmul.mubr.f32.gmra.mrb[0].mxu0 %v1889
    %v1966 = vpop.f32.mrb[0].mxu0
    %v1967 = vadd.f32 0.0, %v1966
    %v1968 = vpop.f32.mrb[0].mxu0
    %1969 = vmatprep.mubr.f32.mxu0 0.0
    %1970 = vmatmul.mubr.f32.gmra.mrb[0].mxu0 %v1892
    %v1971 = vpop.f32.mrb[0].mxu0
    %v1972 = vadd.f32 0.0, %v1971
    %v1973 = vpop.f32.mrb[0].mxu0
    %1974 = vmatprep.mubr.f32.mxu0 0.0
    %1975 = vmatmul.mubr.f32.gmra.mrb[0].mxu0 %v1895
    %v1976 = vpop.f32.mrb[0].mxu0
    %v1977 = vadd.f32 0.0, %v1976
    %v1978 = vpop.f32.mrb[0].mxu0
    %1979 = vmatprep.mubr.f32.mxu0 0.0
    %1980 = vmatmul.mubr.f32.gmra.mrb[0].mxu0 %v1898
    %v1981 = vpop.f32.mrb[0].mxu0
    %v1982 = vadd.f32 0.0, %v1981
    %v1983 = vpop.f32.mrb[0].mxu0
    %1984 = vdwg.mxu0
    %v1985 = vmul.f32 %v1967, %v1884
    %v1986 = vmul.f32 %v1972, %v1885
    %v1987 = vmul.f32 %v1977, %v1886
    %v1988 = vmul.f32 %v1982, %v1887
    %1989 = vrot.lane.b32.xlu0 %v389, 64
    %v1990 = vpop.permute.xlu0 %1989
    %1991 = vrot.lane.b32.xlu0 %v395, 64
    %v1992 = vpop.permute.xlu0 %1991
    %1993 = vrot.lane.b32.xlu0 %v401, 64
    %v1994 = vpop.permute.xlu0 %1993
    %1995 = vrot.lane.b32.xlu0 %v407, 64
    %v1996 = vpop.permute.xlu0 %1995
    %1997 = vrot.lane.b32.xlu0 %v502, 64
    %v1998 = vpop.permute.xlu0 %1997
    %1999 = vrot.lane.b32.xlu0 %v508, 64
    %v2000 = vpop.permute.xlu0 %1999
    %2001 = vrot.lane.b32.xlu0 %v514, 64
    %v2002 = vpop.permute.xlu0 %2001
    %2003 = vrot.lane.b32.xlu0 %v520, 64
    %v2004 = vpop.permute.xlu0 %2003
    %v2005 = vsel %vm641, %v1990, 0
    %v2007 = vsel %vm641, %v1992, 0
    %v2009 = vsel %vm641, %v1994, 0
    %v2011 = vsel %vm641, %v1996, 0
    %v2013 = vsel %vm641, %v1998, 0
    %v2015 = vsel %vm641, %v2000, 0
    %v2017 = vsel %vm641, %v2002, 0
    %v2019 = vsel %vm641, %v2004, 0
    %2021 = vmatprep.subr.mxu0 0.0
    %2022 = vmatpush1.xpose.msra.mxu0 %v2013
    %2023 = vmatprep.subr.mxu0 0.0
    %2024 = vmatpush1.xpose.msra.mxu0 %v2015
    %2025 = vmatprep.subr.mxu0 0.0
    %2026 = vmatpush1.xpose.msra.mxu0 %v2017
    %2027 = vmatprep.subr.mxu0 0.0
    %2028 = vmatpush1.xpose.msra.mxu0 %v2019
    %2029 = vmatprep.subr.mxu0 0.0
    %2030 = vmatpush1.xpose.msra.mxu0 0.0
    %2031 = vmatprep.subr.mxu0 0.0
    %2032 = vmatpush1.xpose.msra.mxu0 0.0
    %2033 = vmatprep.subr.mxu0 0.0
    %2034 = vmatpush1.xpose.msra.mxu0 0.0
    %2035 = vmatprep.subr.mxu0 0.0
    %2036 = vmatpush1.xpose.msra.mxu0 0.0
    %2037 = vmatprep.subr.mxu0 0.0
    %2038 = vmatpush1.xpose.msra.mxu0 0.0
    %2039 = vmatprep.subr.mxu0 0.0
    %2040 = vmatpush1.xpose.msra.mxu0 0.0
    %2041 = vmatprep.subr.mxu0 0.0
    %2042 = vmatpush1.xpose.msra.mxu0 0.0
    %2043 = vmatprep.subr.mxu0 0.0
    %2044 = vmatpush1.xpose.msra.mxu0 0.0
    %2045 = vmatprep.subr.mxu0 0.0
    %2046 = vmatpush1.xpose.msra.mxu0 0.0
    %2047 = vmatprep.subr.mxu0 0.0
    %2048 = vmatpush1.xpose.msra.mxu0 0.0
    %2049 = vmatprep.subr.mxu0 0.0
    %2050 = vmatpush1.xpose.msra.mxu0 0.0
    %2051 = vmatprep.subr.mxu0 0.0
    %2052 = vmatpush1.xpose.msra.mxu0 0.0
    %2053 = vmatprep.subr.mxu0 0.0
    %2054 = vmatpush1.xpose.msra.mxu0 0.0
    %2055 = vmatprep.subr.mxu0 0.0
    %2056 = vmatpush1.xpose.msra.mxu0 0.0
    %2057 = vmatprep.subr.mxu0 0.0
    %2058 = vmatpush1.xpose.msra.mxu0 0.0
    %2059 = vmatprep.subr.mxu0 0.0
    %2060 = vmatpush1.xpose.msra.mxu0 0.0
    %2061 = vmatprep.subr.mxu0 0.0
    %2062 = vmatpush1.xpose.msra.mxu0 0.0
    %2063 = vmatprep.subr.mxu0 0.0
    %2064 = vmatpush1.xpose.msra.mxu0 0.0
    %2065 = vmatprep.subr.mxu0 0.0
    %2066 = vmatpush1.xpose.msra.mxu0 0.0
    %2067 = vmatprep.subr.mxu0 0.0
    %2068 = vmatpush1.xpose.msra.mxu0 0.0
    %2069 = vmatprep.subr.mxu0 0.0
    %2070 = vmatpush1.xpose.msra.mxu0 0.0
    %2071 = vmatprep.subr.mxu0 0.0
    %2072 = vmatpush1.xpose.msra.mxu0 0.0
    %2073 = vmatprep.subr.mxu0 0.0
    %2074 = vmatpush1.xpose.msra.mxu0 0.0
    %2075 = vmatprep.subr.mxu0 0.0
    %2076 = vmatpush1.xpose.msra.mxu0 0.0
    %2077 = vmatprep.subr.mxu0 0.0
    %2078 = vmatpush1.xpose.msra.mxu0 0.0
    %2079 = vmatprep.subr.mxu0 0.0
    %2080 = vmatpush1.xpose.msra.mxu0 0.0
    %2081 = vmatprep.subr.mxu0 0.0
    %2082 = vmatpush1.xpose.msra.mxu0 0.0
    %2083 = vmatprep.subr.mxu0 0.0
    %2084 = vmatpush1.xpose.msra.mxu0 0.0
    %2085 = vmatprep.mubr.f32.mxu0 0.0
    %2086 = vmatmul.mubr.f32.gmra.mrb[0].mxu0 %v2005
    %v2087 = vpop.f32.mrb[0].mxu0
    %v2088 = vadd.f32 %v637, %v2087
    %v2089 = vpop.f32.mrb[0].mxu0
    %2090 = vmatprep.mubr.f32.mxu0 0.0
    %2091 = vmatmul.mubr.f32.gmra.mrb[0].mxu0 %v2007
    %v2092 = vpop.f32.mrb[0].mxu0
    %v2093 = vadd.f32 %v638, %v2092
    %v2094 = vpop.f32.mrb[0].mxu0
    %2095 = vmatprep.mubr.f32.mxu0 0.0
    %2096 = vmatmul.mubr.f32.gmra.mrb[0].mxu0 %v2009
    %v2097 = vpop.f32.mrb[0].mxu0
    %v2098 = vadd.f32 %v639, %v2097
    %v2099 = vpop.f32.mrb[0].mxu0
    %2100 = vmatprep.mubr.f32.mxu0 0.0
    %2101 = vmatmul.mubr.f32.gmra.mrb[0].mxu0 %v2011
    %v2102 = vpop.f32.mrb[0].mxu0
    %v2103 = vadd.f32 %v640, %v2102
    %v2104 = vpop.f32.mrb[0].mxu0
    %2105 = vdwg.mxu0
    %v2106 = vsel %vm751, %v2088, -inf
    %2107 = vmax.xlane.f32.xlu0 %v2106
    %v2108 = vpop.xlane.xlu0 %2107
    %v2109 = vsel %vm751, %v2093, -inf
    %2110 = vmax.xlane.f32.xlu0 %v2109
    %v2111 = vpop.xlane.xlu0 %2110
    %v2112 = vsel %vm751, %v2098, -inf
    %2113 = vmax.xlane.f32.xlu0 %v2112
    %v2114 = vpop.xlane.xlu0 %2113
    %v2115 = vsel %vm751, %v2103, -inf
    %2116 = vmax.xlane.f32.xlu0 %v2115
    %v2117 = vpop.xlane.xlu0 %2116
    %v2118 = vsub.f32 %v2088, %v2108
    %v2119 = vsub.f32 %v2093, %v2111
    %v2120 = vsub.f32 %v2098, %v2114
    %v2121 = vsub.f32 %v2103, %v2117
    %v2122 = vmul.f32 %v2118, 1.442695
    %v2123 = vpow.pop %v2122
    %v2124 = vmul.f32 %v2119, 1.442695
    %v2125 = vpow.pop %v2124
    %v2126 = vmul.f32 %v2120, 1.442695
    %v2127 = vpow.pop %v2126
    %v2128 = vmul.f32 %v2121, 1.442695
    %v2129 = vpow.pop %v2128
    %v2130 = vsel %vm751, %v2123, 0.0
    %2131 = vadd.xlane.f32.xlu0 %v2130
    %v2132 = vpop.xlane.xlu0 %2131
    %v2133 = vsel %vm751, %v2125, 0.0
    %2134 = vadd.xlane.f32.xlu0 %v2133
    %v2135 = vpop.xlane.xlu0 %2134
    %v2136 = vsel %vm751, %v2127, 0.0
    %2137 = vadd.xlane.f32.xlu0 %v2136
    %v2138 = vpop.xlane.xlu0 %2137
    %v2139 = vsel %vm751, %v2129, 0.0
    %2140 = vadd.xlane.f32.xlu0 %v2139
    %v2141 = vpop.xlane.xlu0 %2140
    %v2142 = vrcp.pop %v2132
    %v2143 = vrcp.pop %v2135
    %v2144 = vrcp.pop %v2138
    %v2145 = vrcp.pop %v2141
    %2150 = vrot.lane.b32.xlu0 %v615, 64
    %v2151 = vpop.permute.xlu0 %2150
    %2152 = vrot.lane.b32.xlu0 %v621, 64
    %v2153 = vpop.permute.xlu0 %2152
    %2154 = vrot.lane.b32.xlu0 %v627, 64
    %v2155 = vpop.permute.xlu0 %2154
    %2156 = vrot.lane.b32.xlu0 %v633, 64
    %v2157 = vpop.permute.xlu0 %2156
    %v2163 = vsel %vm751, %v2123, 0
    %v2166 = vsel %vm751, %v2125, 0
    %v2169 = vsel %vm751, %v2127, 0
    %v2172 = vsel %vm751, %v2129, 0
    %2174 = vmatprep.subr.mxu0 0.0
    %2175 = vmatpush1.msra.mxu0 %v2151
    %2176 = vmatprep.subr.mxu0 0.0
    %2177 = vmatpush1.msra.mxu0 %v2153
    %2178 = vmatprep.subr.mxu0 0.0
    %2179 = vmatpush1.msra.mxu0 %v2155
    %2180 = vmatprep.subr.mxu0 0.0
    %2181 = vmatpush1.msra.mxu0 %v2157
    %2182 = vmatprep.subr.mxu0 0.0
    %2183 = vmatpush1.msra.mxu0 0.0
    %2184 = vmatprep.subr.mxu0 0.0
    %2185 = vmatpush1.msra.mxu0 0.0
    %2186 = vmatprep.subr.mxu0 0.0
    %2187 = vmatpush1.msra.mxu0 0.0
    %2188 = vmatprep.subr.mxu0 0.0
    %2189 = vmatpush1.msra.mxu0 0.0
    %2190 = vmatprep.subr.mxu0 0.0
    %2191 = vmatpush1.msra.mxu0 0.0
    %2192 = vmatprep.subr.mxu0 0.0
    %2193 = vmatpush1.msra.mxu0 0.0
    %2194 = vmatprep.subr.mxu0 0.0
    %2195 = vmatpush1.msra.mxu0 0.0
    %2196 = vmatprep.subr.mxu0 0.0
    %2197 = vmatpush1.msra.mxu0 0.0
    %2198 = vmatprep.subr.mxu0 0.0
    %2199 = vmatpush1.msra.mxu0 0.0
    %2200 = vmatprep.subr.mxu0 0.0
    %2201 = vmatpush1.msra.mxu0 0.0
    %2202 = vmatprep.subr.mxu0 0.0
    %2203 = vmatpush1.msra.mxu0 0.0
    %2204 = vmatprep.subr.mxu0 0.0
    %2205 = vmatpush1.msra.mxu0 0.0
    %2206 = vmatprep.subr.mxu0 0.0
    %2207 = vmatpush1.msra.mxu0 0.0
    %2208 = vmatprep.subr.mxu0 0.0
    %2209 = vmatpush1.msra.mxu0 0.0
    %2210 = vmatprep.subr.mxu0 0.0
    %2211 = vmatpush1.msra.mxu0 0.0
    %2212 = vmatprep.subr.mxu0 0.0
    %2213 = vmatpush1.msra.mxu0 0.0
    %2214 = vmatprep.subr.mxu0 0.0
    %2215 = vmatpush1.msra.mxu0 0.0
    %2216 = vmatprep.subr.mxu0 0.0
    %2217 = vmatpush1.msra.mxu0 0.0
    %2218 = vmatprep.subr.mxu0 0.0
    %2219 = vmatpush1.msra.mxu0 0.0
    %2220 = vmatprep.subr.mxu0 0.0
    %2221 = vmatpush1.msra.mxu0 0.0
    %2222 = vmatprep.subr.mxu0 0.0
    %2223 = vmatpush1.msra.mxu0 0.0
    %2224 = vmatprep.subr.mxu0 0.0
    %2225 = vmatpush1.msra.mxu0 0.0
    %2226 = vmatprep.subr.mxu0 0.0
    %2227 = vmatpush1.msra.mxu0 0.0
    %2228 = vmatprep.subr.mxu0 0.0
    %2229 = vmatpush1.msra.mxu0 0.0
    %2230 = vmatprep.subr.mxu0 0.0
    %2231 = vmatpush1.msra.mxu0 0.0
    %2232 = vmatprep.subr.mxu0 0.0
    %2233 = vmatpush1.msra.mxu0 0.0
    %2234 = vmatprep.subr.mxu0 0.0
    %2235 = vmatpush1.msra.mxu0 0.0
    %2236 = vmatprep.subr.mxu0 0.0
    %2237 = vmatpush1.msra.mxu0 0.0
    %2238 = vmatprep.mubr.f32.mxu0 0.0
    %2239 = vmatmul.mubr.f32.gmra.mrb[0].mxu0 %v2163
    %v2240 = vpop.f32.mrb[0].mxu0
    %v2241 = vadd.f32 0.0, %v2240
    %v2242 = vpop.f32.mrb[0].mxu0
    %2243 = vmatprep.mubr.f32.mxu0 0.0
    %2244 = vmatmul.mubr.f32.gmra.mrb[0].mxu0 %v2166
    %v2245 = vpop.f32.mrb[0].mxu0
    %v2246 = vadd.f32 0.0, %v2245
    %v2247 = vpop.f32.mrb[0].mxu0
    %2248 = vmatprep.mubr.f32.mxu0 0.0
    %2249 = vmatmul.mubr.f32.gmra.mrb[0].mxu0 %v2169
    %v2250 = vpop.f32.mrb[0].mxu0
    %v2251 = vadd.f32 0.0, %v2250
    %v2252 = vpop.f32.mrb[0].mxu0
    %2253 = vmatprep.mubr.f32.mxu0 0.0
    %2254 = vmatmul.mubr.f32.gmra.mrb[0].mxu0 %v2172
    %v2255 = vpop.f32.mrb[0].mxu0
    %v2256 = vadd.f32 0.0, %v2255
    %v2257 = vpop.f32.mrb[0].mxu0
    %2258 = vdwg.mxu0
    %v2259 = vmul.f32 %v2241, %v2142
    %v2260 = vmul.f32 %v2246, %v2143
    %v2261 = vmul.f32 %v2251, %v2144
    %v2262 = vmul.f32 %v2256, %v2145
    %v2264 = vsel %vm641, %v391, 0
    %v2267 = vsel %vm641, %v397, 0
    %v2270 = vsel %vm641, %v403, 0
    %v2273 = vsel %vm641, %v409, 0
    %v2276 = vsel %vm641, %v504, 0
    %v2279 = vsel %vm641, %v510, 0
    %v2282 = vsel %vm641, %v516, 0
    %v2285 = vsel %vm641, %v522, 0
    %2287 = vmatprep.subr.mxu0 0.0
    %2288 = vmatpush1.xpose.msra.mxu0 %v2276
    %2289 = vmatprep.subr.mxu0 0.0
    %2290 = vmatpush1.xpose.msra.mxu0 %v2279
    %2291 = vmatprep.subr.mxu0 0.0
    %2292 = vmatpush1.xpose.msra.mxu0 %v2282
    %2293 = vmatprep.subr.mxu0 0.0
    %2294 = vmatpush1.xpose.msra.mxu0 %v2285
    %2295 = vmatprep.subr.mxu0 0.0
    %2296 = vmatpush1.xpose.msra.mxu0 0.0
    %2297 = vmatprep.subr.mxu0 0.0
    %2298 = vmatpush1.xpose.msra.mxu0 0.0
    %2299 = vmatprep.subr.mxu0 0.0
    %2300 = vmatpush1.xpose.msra.mxu0 0.0
    %2301 = vmatprep.subr.mxu0 0.0
    %2302 = vmatpush1.xpose.msra.mxu0 0.0
    %2303 = vmatprep.subr.mxu0 0.0
    %2304 = vmatpush1.xpose.msra.mxu0 0.0
    %2305 = vmatprep.subr.mxu0 0.0
    %2306 = vmatpush1.xpose.msra.mxu0 0.0
    %2307 = vmatprep.subr.mxu0 0.0
    %2308 = vmatpush1.xpose.msra.mxu0 0.0
    %2309 = vmatprep.subr.mxu0 0.0
    %2310 = vmatpush1.xpose.msra.mxu0 0.0
    %2311 = vmatprep.subr.mxu0 0.0
    %2312 = vmatpush1.xpose.msra.mxu0 0.0
    %2313 = vmatprep.subr.mxu0 0.0
    %2314 = vmatpush1.xpose.msra.mxu0 0.0
    %2315 = vmatprep.subr.mxu0 0.0
    %2316 = vmatpush1.xpose.msra.mxu0 0.0
    %2317 = vmatprep.subr.mxu0 0.0
    %2318 = vmatpush1.xpose.msra.mxu0 0.0
    %2319 = vmatprep.subr.mxu0 0.0
    %2320 = vmatpush1.xpose.msra.mxu0 0.0
    %2321 = vmatprep.subr.mxu0 0.0
    %2322 = vmatpush1.xpose.msra.mxu0 0.0
    %2323 = vmatprep.subr.mxu0 0.0
    %2324 = vmatpush1.xpose.msra.mxu0 0.0
    %2325 = vmatprep.subr.mxu0 0.0
    %2326 = vmatpush1.xpose.msra.mxu0 0.0
    %2327 = vmatprep.subr.mxu0 0.0
    %2328 = vmatpush1.xpose.msra.mxu0 0.0
    %2329 = vmatprep.subr.mxu0 0.0
    %2330 = vmatpush1.xpose.msra.mxu0 0.0
    %2331 = vmatprep.subr.mxu0 0.0
    %2332 = vmatpush1.xpose.msra.mxu0 0.0
    %2333 = vmatprep.subr.mxu0 0.0
    %2334 = vmatpush1.xpose.msra.mxu0 0.0
    %2335 = vmatprep.subr.mxu0 0.0
    %2336 = vmatpush1.xpose.msra.mxu0 0.0
    %2337 = vmatprep.subr.mxu0 0.0
    %2338 = vmatpush1.xpose.msra.mxu0 0.0
    %2339 = vmatprep.subr.mxu0 0.0
    %2340 = vmatpush1.xpose.msra.mxu0 0.0
    %2341 = vmatprep.subr.mxu0 0.0
    %2342 = vmatpush1.xpose.msra.mxu0 0.0
    %2343 = vmatprep.subr.mxu0 0.0
    %2344 = vmatpush1.xpose.msra.mxu0 0.0
    %2345 = vmatprep.subr.mxu0 0.0
    %2346 = vmatpush1.xpose.msra.mxu0 0.0
    %2347 = vmatprep.subr.mxu0 0.0
    %2348 = vmatpush1.xpose.msra.mxu0 0.0
    %2349 = vmatprep.subr.mxu0 0.0
    %2350 = vmatpush1.xpose.msra.mxu0 0.0
    %2351 = vmatprep.mubr.f32.mxu0 0.0
    %2352 = vmatmul.mubr.f32.gmra.mrb[0].mxu0 %v2264
    %v2353 = vpop.f32.mrb[0].mxu0
    %v2354 = vadd.f32 %v637, %v2353
    %v2355 = vpop.f32.mrb[0].mxu0
    %2356 = vmatprep.mubr.f32.mxu0 0.0
    %2357 = vmatmul.mubr.f32.gmra.mrb[0].mxu0 %v2267
    %v2358 = vpop.f32.mrb[0].mxu0
    %v2359 = vadd.f32 %v638, %v2358
    %v2360 = vpop.f32.mrb[0].mxu0
    %2361 = vmatprep.mubr.f32.mxu0 0.0
    %2362 = vmatmul.mubr.f32.gmra.mrb[0].mxu0 %v2270
    %v2363 = vpop.f32.mrb[0].mxu0
    %v2364 = vadd.f32 %v639, %v2363
    %v2365 = vpop.f32.mrb[0].mxu0
    %2366 = vmatprep.mubr.f32.mxu0 0.0
    %2367 = vmatmul.mubr.f32.gmra.mrb[0].mxu0 %v2273
    %v2368 = vpop.f32.mrb[0].mxu0
    %v2369 = vadd.f32 %v640, %v2368
    %v2370 = vpop.f32.mrb[0].mxu0
    %2371 = vdwg.mxu0
    %v2372 = vsel %vm751, %v2354, -inf
    %2373 = vmax.xlane.f32.xlu0 %v2372
    %v2374 = vpop.xlane.xlu0 %2373
    %v2375 = vsel %vm751, %v2359, -inf
    %2376 = vmax.xlane.f32.xlu0 %v2375
    %v2377 = vpop.xlane.xlu0 %2376
    %v2378 = vsel %vm751, %v2364, -inf
    %2379 = vmax.xlane.f32.xlu0 %v2378
    %v2380 = vpop.xlane.xlu0 %2379
    %v2381 = vsel %vm751, %v2369, -inf
    %2382 = vmax.xlane.f32.xlu0 %v2381
    %v2383 = vpop.xlane.xlu0 %2382
    %v2384 = vsub.f32 %v2354, %v2374
    %v2385 = vsub.f32 %v2359, %v2377
    %v2386 = vsub.f32 %v2364, %v2380
    %v2387 = vsub.f32 %v2369, %v2383
    %v2388 = vmul.f32 %v2384, 1.442695
    %v2389 = vpow.pop %v2388
    %v2390 = vmul.f32 %v2385, 1.442695
    %v2391 = vpow.pop %v2390
    %v2392 = vmul.f32 %v2386, 1.442695
    %v2393 = vpow.pop %v2392
    %v2394 = vmul.f32 %v2387, 1.442695
    %v2395 = vpow.pop %v2394
    %v2396 = vsel %vm751, %v2389, 0.0
    %2397 = vadd.xlane.f32.xlu0 %v2396
    %v2398 = vpop.xlane.xlu0 %2397
    %v2399 = vsel %vm751, %v2391, 0.0
    %2400 = vadd.xlane.f32.xlu0 %v2399
    %v2401 = vpop.xlane.xlu0 %2400
    %v2402 = vsel %vm751, %v2393, 0.0
    %2403 = vadd.xlane.f32.xlu0 %v2402
    %v2404 = vpop.xlane.xlu0 %2403
    %v2405 = vsel %vm751, %v2395, 0.0
    %2406 = vadd.xlane.f32.xlu0 %v2405
    %v2407 = vpop.xlane.xlu0 %2406
    %v2408 = vrcp.pop %v2398
    %v2409 = vrcp.pop %v2401
    %v2410 = vrcp.pop %v2404
    %v2411 = vrcp.pop %v2407
    %v2413 = vsel %vm751, %v2389, 0
    %v2416 = vsel %vm751, %v2391, 0
    %v2419 = vsel %vm751, %v2393, 0
    %v2422 = vsel %vm751, %v2395, 0
    %2424 = vmatprep.subr.mxu0 0.0
    %2425 = vmatpush1.msra.mxu0 %v617
    %2426 = vmatprep.subr.mxu0 0.0
    %2427 = vmatpush1.msra.mxu0 %v623
    %2428 = vmatprep.subr.mxu0 0.0
    %2429 = vmatpush1.msra.mxu0 %v629
    %2430 = vmatprep.subr.mxu0 0.0
    %2431 = vmatpush1.msra.mxu0 %v635
    %2432 = vmatprep.subr.mxu0 0.0
    %2433 = vmatpush1.msra.mxu0 0.0
    %2434 = vmatprep.subr.mxu0 0.0
    %2435 = vmatpush1.msra.mxu0 0.0
    %2436 = vmatprep.subr.mxu0 0.0
    %2437 = vmatpush1.msra.mxu0 0.0
    %2438 = vmatprep.subr.mxu0 0.0
    %2439 = vmatpush1.msra.mxu0 0.0
    %2440 = vmatprep.subr.mxu0 0.0
    %2441 = vmatpush1.msra.mxu0 0.0
    %2442 = vmatprep.subr.mxu0 0.0
    %2443 = vmatpush1.msra.mxu0 0.0
    %2444 = vmatprep.subr.mxu0 0.0
    %2445 = vmatpush1.msra.mxu0 0.0
    %2446 = vmatprep.subr.mxu0 0.0
    %2447 = vmatpush1.msra.mxu0 0.0
    %2448 = vmatprep.subr.mxu0 0.0
    %2449 = vmatpush1.msra.mxu0 0.0
    %2450 = vmatprep.subr.mxu0 0.0
    %2451 = vmatpush1.msra.mxu0 0.0
    %2452 = vmatprep.subr.mxu0 0.0
    %2453 = vmatpush1.msra.mxu0 0.0
    %2454 = vmatprep.subr.mxu0 0.0
    %2455 = vmatpush1.msra.mxu0 0.0
    %2456 = vmatprep.subr.mxu0 0.0
    %2457 = vmatpush1.msra.mxu0 0.0
    %2458 = vmatprep.subr.mxu0 0.0
    %2459 = vmatpush1.msra.mxu0 0.0
    %2460 = vmatprep.subr.mxu0 0.0
    %2461 = vmatpush1.msra.mxu0 0.0
    %2462 = vmatprep.subr.mxu0 0.0
    %2463 = vmatpush1.msra.mxu0 0.0
    %2464 = vmatprep.subr.mxu0 0.0
    %2465 = vmatpush1.msra.mxu0 0.0
    %2466 = vmatprep.subr.mxu0 0.0
    %2467 = vmatpush1.msra.mxu0 0.0
    %2468 = vmatprep.subr.mxu0 0.0
    %2469 = vmatpush1.msra.mxu0 0.0
    %2470 = vmatprep.subr.mxu0 0.0
    %2471 = vmatpush1.msra.mxu0 0.0
    %2472 = vmatprep.subr.mxu0 0.0
    %2473 = vmatpush1.msra.mxu0 0.0
    %2474 = vmatprep.subr.mxu0 0.0
    %2475 = vmatpush1.msra.mxu0 0.0
    %2476 = vmatprep.subr.mxu0 0.0
    %2477 = vmatpush1.msra.mxu0 0.0
    %2478 = vmatprep.subr.mxu0 0.0
    %2479 = vmatpush1.msra.mxu0 0.0
    %2480 = vmatprep.subr.mxu0 0.0
    %2481 = vmatpush1.msra.mxu0 0.0
    %2482 = vmatprep.subr.mxu0 0.0
    %2483 = vmatpush1.msra.mxu0 0.0
    %2484 = vmatprep.subr.mxu0 0.0
    %2485 = vmatpush1.msra.mxu0 0.0
    %2486 = vmatprep.subr.mxu0 0.0
    %2487 = vmatpush1.msra.mxu0 0.0
    %2488 = vmatprep.mubr.f32.mxu0 0.0
    %2489 = vmatmul.mubr.f32.gmra.mrb[0].mxu0 %v2413
    %v2490 = vpop.f32.mrb[0].mxu0
    %v2491 = vadd.f32 0.0, %v2490
    %v2492 = vpop.f32.mrb[0].mxu0
    %2493 = vmatprep.mubr.f32.mxu0 0.0
    %2494 = vmatmul.mubr.f32.gmra.mrb[0].mxu0 %v2416
    %v2495 = vpop.f32.mrb[0].mxu0
    %v2496 = vadd.f32 0.0, %v2495
    %v2497 = vpop.f32.mrb[0].mxu0
    %2498 = vmatprep.mubr.f32.mxu0 0.0
    %2499 = vmatmul.mubr.f32.gmra.mrb[0].mxu0 %v2419
    %v2500 = vpop.f32.mrb[0].mxu0
    %v2501 = vadd.f32 0.0, %v2500
    %v2502 = vpop.f32.mrb[0].mxu0
    %2503 = vmatprep.mubr.f32.mxu0 0.0
    %2504 = vmatmul.mubr.f32.gmra.mrb[0].mxu0 %v2422
    %v2505 = vpop.f32.mrb[0].mxu0
    %v2506 = vadd.f32 0.0, %v2505
    %v2507 = vpop.f32.mrb[0].mxu0
    %2508 = vdwg.mxu0
    %v2509 = vmul.f32 %v2491, %v2408
    %v2510 = vmul.f32 %v2496, %v2409
    %v2511 = vmul.f32 %v2501, %v2410
    %v2512 = vmul.f32 %v2506, %v2411
    %2513 = vrot.lane.b32.xlu0 %v391, 64
    %v2514 = vpop.permute.xlu0 %2513
    %2515 = vrot.lane.b32.xlu0 %v397, 64
    %v2516 = vpop.permute.xlu0 %2515
    %2517 = vrot.lane.b32.xlu0 %v403, 64
    %v2518 = vpop.permute.xlu0 %2517
    %2519 = vrot.lane.b32.xlu0 %v409, 64
    %v2520 = vpop.permute.xlu0 %2519
    %2521 = vrot.lane.b32.xlu0 %v504, 64
    %v2522 = vpop.permute.xlu0 %2521
    %2523 = vrot.lane.b32.xlu0 %v510, 64
    %v2524 = vpop.permute.xlu0 %2523
    %2525 = vrot.lane.b32.xlu0 %v516, 64
    %v2526 = vpop.permute.xlu0 %2525
    %2527 = vrot.lane.b32.xlu0 %v522, 64
    %v2528 = vpop.permute.xlu0 %2527
    %v2529 = vsel %vm641, %v2514, 0
    %v2531 = vsel %vm641, %v2516, 0
    %v2533 = vsel %vm641, %v2518, 0
    %v2535 = vsel %vm641, %v2520, 0
    %v2537 = vsel %vm641, %v2522, 0
    %v2539 = vsel %vm641, %v2524, 0
    %v2541 = vsel %vm641, %v2526, 0
    %v2543 = vsel %vm641, %v2528, 0
    %2545 = vmatprep.subr.mxu0 0.0
    %2546 = vmatpush1.xpose.msra.mxu0 %v2537
    %2547 = vmatprep.subr.mxu0 0.0
    %2548 = vmatpush1.xpose.msra.mxu0 %v2539
    %2549 = vmatprep.subr.mxu0 0.0
    %2550 = vmatpush1.xpose.msra.mxu0 %v2541
    %2551 = vmatprep.subr.mxu0 0.0
    %2552 = vmatpush1.xpose.msra.mxu0 %v2543
    %2553 = vmatprep.subr.mxu0 0.0
    %2554 = vmatpush1.xpose.msra.mxu0 0.0
    %2555 = vmatprep.subr.mxu0 0.0
    %2556 = vmatpush1.xpose.msra.mxu0 0.0
    %2557 = vmatprep.subr.mxu0 0.0
    %2558 = vmatpush1.xpose.msra.mxu0 0.0
    %2559 = vmatprep.subr.mxu0 0.0
    %2560 = vmatpush1.xpose.msra.mxu0 0.0
    %2561 = vmatprep.subr.mxu0 0.0
    %2562 = vmatpush1.xpose.msra.mxu0 0.0
    %2563 = vmatprep.subr.mxu0 0.0
    %2564 = vmatpush1.xpose.msra.mxu0 0.0
    %2565 = vmatprep.subr.mxu0 0.0
    %2566 = vmatpush1.xpose.msra.mxu0 0.0
    %2567 = vmatprep.subr.mxu0 0.0
    %2568 = vmatpush1.xpose.msra.mxu0 0.0
    %2569 = vmatprep.subr.mxu0 0.0
    %2570 = vmatpush1.xpose.msra.mxu0 0.0
    %2571 = vmatprep.subr.mxu0 0.0
    %2572 = vmatpush1.xpose.msra.mxu0 0.0
    %2573 = vmatprep.subr.mxu0 0.0
    %2574 = vmatpush1.xpose.msra.mxu0 0.0
    %2575 = vmatprep.subr.mxu0 0.0
    %2576 = vmatpush1.xpose.msra.mxu0 0.0
    %2577 = vmatprep.subr.mxu0 0.0
    %2578 = vmatpush1.xpose.msra.mxu0 0.0
    %2579 = vmatprep.subr.mxu0 0.0
    %2580 = vmatpush1.xpose.msra.mxu0 0.0
    %2581 = vmatprep.subr.mxu0 0.0
    %2582 = vmatpush1.xpose.msra.mxu0 0.0
    %2583 = vmatprep.subr.mxu0 0.0
    %2584 = vmatpush1.xpose.msra.mxu0 0.0
    %2585 = vmatprep.subr.mxu0 0.0
    %2586 = vmatpush1.xpose.msra.mxu0 0.0
    %2587 = vmatprep.subr.mxu0 0.0
    %2588 = vmatpush1.xpose.msra.mxu0 0.0
    %2589 = vmatprep.subr.mxu0 0.0
    %2590 = vmatpush1.xpose.msra.mxu0 0.0
    %2591 = vmatprep.subr.mxu0 0.0
    %2592 = vmatpush1.xpose.msra.mxu0 0.0
    %2593 = vmatprep.subr.mxu0 0.0
    %2594 = vmatpush1.xpose.msra.mxu0 0.0
    %2595 = vmatprep.subr.mxu0 0.0
    %2596 = vmatpush1.xpose.msra.mxu0 0.0
    %2597 = vmatprep.subr.mxu0 0.0
    %2598 = vmatpush1.xpose.msra.mxu0 0.0
    %2599 = vmatprep.subr.mxu0 0.0
    %2600 = vmatpush1.xpose.msra.mxu0 0.0
    %2601 = vmatprep.subr.mxu0 0.0
    %2602 = vmatpush1.xpose.msra.mxu0 0.0
    %2603 = vmatprep.subr.mxu0 0.0
    %2604 = vmatpush1.xpose.msra.mxu0 0.0
    %2605 = vmatprep.subr.mxu0 0.0
    %2606 = vmatpush1.xpose.msra.mxu0 0.0
    %2607 = vmatprep.subr.mxu0 0.0
    %2608 = vmatpush1.xpose.msra.mxu0 0.0
    %2609 = vmatprep.mubr.f32.mxu0 0.0
    %2610 = vmatmul.mubr.f32.gmra.mrb[0].mxu0 %v2529
    %v2611 = vpop.f32.mrb[0].mxu0
    %v2612 = vadd.f32 %v637, %v2611
    %v2613 = vpop.f32.mrb[0].mxu0
    %2614 = vmatprep.mubr.f32.mxu0 0.0
    %2615 = vmatmul.mubr.f32.gmra.mrb[0].mxu0 %v2531
    %v2616 = vpop.f32.mrb[0].mxu0
    %v2617 = vadd.f32 %v638, %v2616
    %v2618 = vpop.f32.mrb[0].mxu0
    %2619 = vmatprep.mubr.f32.mxu0 0.0
    %2620 = vmatmul.mubr.f32.gmra.mrb[0].mxu0 %v2533
    %v2621 = vpop.f32.mrb[0].mxu0
    %v2622 = vadd.f32 %v639, %v2621
    %v2623 = vpop.f32.mrb[0].mxu0
    %2624 = vmatprep.mubr.f32.mxu0 0.0
    %2625 = vmatmul.mubr.f32.gmra.mrb[0].mxu0 %v2535
    %v2626 = vpop.f32.mrb[0].mxu0
    %v2627 = vadd.f32 %v640, %v2626
    %v2628 = vpop.f32.mrb[0].mxu0
    %2629 = vdwg.mxu0
    %v2630 = vsel %vm751, %v2612, -inf
    %2631 = vmax.xlane.f32.xlu0 %v2630
    %v2632 = vpop.xlane.xlu0 %2631
    %v2633 = vsel %vm751, %v2617, -inf
    %2634 = vmax.xlane.f32.xlu0 %v2633
    %v2635 = vpop.xlane.xlu0 %2634
    %v2636 = vsel %vm751, %v2622, -inf
    %2637 = vmax.xlane.f32.xlu0 %v2636
    %v2638 = vpop.xlane.xlu0 %2637
    %v2639 = vsel %vm751, %v2627, -inf
    %2640 = vmax.xlane.f32.xlu0 %v2639
    %v2641 = vpop.xlane.xlu0 %2640
    %v2642 = vsub.f32 %v2612, %v2632
    %v2643 = vsub.f32 %v2617, %v2635
    %v2644 = vsub.f32 %v2622, %v2638
    %v2645 = vsub.f32 %v2627, %v2641
    %v2646 = vmul.f32 %v2642, 1.442695
    %v2647 = vpow.pop %v2646
    %v2648 = vmul.f32 %v2643, 1.442695
    %v2649 = vpow.pop %v2648
    %v2650 = vmul.f32 %v2644, 1.442695
    %v2651 = vpow.pop %v2650
    %v2652 = vmul.f32 %v2645, 1.442695
    %v2653 = vpow.pop %v2652
    %v2654 = vsel %vm751, %v2647, 0.0
    %2655 = vadd.xlane.f32.xlu0 %v2654
    %v2656 = vpop.xlane.xlu0 %2655
    %v2657 = vsel %vm751, %v2649, 0.0
    %2658 = vadd.xlane.f32.xlu0 %v2657
    %v2659 = vpop.xlane.xlu0 %2658
    %v2660 = vsel %vm751, %v2651, 0.0
    %2661 = vadd.xlane.f32.xlu0 %v2660
    %v2662 = vpop.xlane.xlu0 %2661
    %v2663 = vsel %vm751, %v2653, 0.0
    %2664 = vadd.xlane.f32.xlu0 %v2663
    %v2665 = vpop.xlane.xlu0 %2664
    %v2666 = vrcp.pop %v2656
    %v2667 = vrcp.pop %v2659
    %v2668 = vrcp.pop %v2662
    %v2669 = vrcp.pop %v2665
    %2674 = vrot.lane.b32.xlu0 %v617, 64
    %v2675 = vpop.permute.xlu0 %2674
    %2676 = vrot.lane.b32.xlu0 %v623, 64
    %v2677 = vpop.permute.xlu0 %2676
    %2678 = vrot.lane.b32.xlu0 %v629, 64
    %v2679 = vpop.permute.xlu0 %2678
    %2680 = vrot.lane.b32.xlu0 %v635, 64
    %v2681 = vpop.permute.xlu0 %2680
    %v2687 = vsel %vm751, %v2647, 0
    %v2690 = vsel %vm751, %v2649, 0
    %v2693 = vsel %vm751, %v2651, 0
    %v2696 = vsel %vm751, %v2653, 0
    %2698 = vmatprep.subr.mxu0 0.0
    %2699 = vmatpush1.msra.mxu0 %v2675
    %2700 = vmatprep.subr.mxu0 0.0
    %2701 = vmatpush1.msra.mxu0 %v2677
    %2702 = vmatprep.subr.mxu0 0.0
    %2703 = vmatpush1.msra.mxu0 %v2679
    %2704 = vmatprep.subr.mxu0 0.0
    %2705 = vmatpush1.msra.mxu0 %v2681
    %2706 = vmatprep.subr.mxu0 0.0
    %2707 = vmatpush1.msra.mxu0 0.0
    %2708 = vmatprep.subr.mxu0 0.0
    %2709 = vmatpush1.msra.mxu0 0.0
    %2710 = vmatprep.subr.mxu0 0.0
    %2711 = vmatpush1.msra.mxu0 0.0
    %2712 = vmatprep.subr.mxu0 0.0
    %2713 = vmatpush1.msra.mxu0 0.0
    %2714 = vmatprep.subr.mxu0 0.0
    %2715 = vmatpush1.msra.mxu0 0.0
    %2716 = vmatprep.subr.mxu0 0.0
    %2717 = vmatpush1.msra.mxu0 0.0
    %2718 = vmatprep.subr.mxu0 0.0
    %2719 = vmatpush1.msra.mxu0 0.0
    %2720 = vmatprep.subr.mxu0 0.0
    %2721 = vmatpush1.msra.mxu0 0.0
    %2722 = vmatprep.subr.mxu0 0.0
    %2723 = vmatpush1.msra.mxu0 0.0
    %2724 = vmatprep.subr.mxu0 0.0
    %2725 = vmatpush1.msra.mxu0 0.0
    %2726 = vmatprep.subr.mxu0 0.0
    %2727 = vmatpush1.msra.mxu0 0.0
    %2728 = vmatprep.subr.mxu0 0.0
    %2729 = vmatpush1.msra.mxu0 0.0
    %2730 = vmatprep.subr.mxu0 0.0
    %2731 = vmatpush1.msra.mxu0 0.0
    %2732 = vmatprep.subr.mxu0 0.0
    %2733 = vmatpush1.msra.mxu0 0.0
    %2734 = vmatprep.subr.mxu0 0.0
    %2735 = vmatpush1.msra.mxu0 0.0
    %2736 = vmatprep.subr.mxu0 0.0
    %2737 = vmatpush1.msra.mxu0 0.0
    %2738 = vmatprep.subr.mxu0 0.0
    %2739 = vmatpush1.msra.mxu0 0.0
    %2740 = vmatprep.subr.mxu0 0.0
    %2741 = vmatpush1.msra.mxu0 0.0
    %2742 = vmatprep.subr.mxu0 0.0
    %2743 = vmatpush1.msra.mxu0 0.0
    %2744 = vmatprep.subr.mxu0 0.0
    %2745 = vmatpush1.msra.mxu0 0.0
    %2746 = vmatprep.subr.mxu0 0.0
    %2747 = vmatpush1.msra.mxu0 0.0
    %2748 = vmatprep.subr.mxu0 0.0
    %2749 = vmatpush1.msra.mxu0 0.0
    %2750 = vmatprep.subr.mxu0 0.0
    %2751 = vmatpush1.msra.mxu0 0.0
    %2752 = vmatprep.subr.mxu0 0.0
    %2753 = vmatpush1.msra.mxu0 0.0
    %2754 = vmatprep.subr.mxu0 0.0
    %2755 = vmatpush1.msra.mxu0 0.0
    %2756 = vmatprep.subr.mxu0 0.0
    %2757 = vmatpush1.msra.mxu0 0.0
    %2758 = vmatprep.subr.mxu0 0.0
    %2759 = vmatpush1.msra.mxu0 0.0
    %2760 = vmatprep.subr.mxu0 0.0
    %2761 = vmatpush1.msra.mxu0 0.0
    %2762 = vmatprep.mubr.f32.mxu0 0.0
    %2763 = vmatmul.mubr.f32.gmra.mrb[0].mxu0 %v2687
    %v2764 = vpop.f32.mrb[0].mxu0
    %v2765 = vadd.f32 0.0, %v2764
    %v2766 = vpop.f32.mrb[0].mxu0
    %2767 = vmatprep.mubr.f32.mxu0 0.0
    %2768 = vmatmul.mubr.f32.gmra.mrb[0].mxu0 %v2690
    %v2769 = vpop.f32.mrb[0].mxu0
    %v2770 = vadd.f32 0.0, %v2769
    %v2771 = vpop.f32.mrb[0].mxu0
    %2772 = vmatprep.mubr.f32.mxu0 0.0
    %2773 = vmatmul.mubr.f32.gmra.mrb[0].mxu0 %v2693
    %v2774 = vpop.f32.mrb[0].mxu0
    %v2775 = vadd.f32 0.0, %v2774
    %v2776 = vpop.f32.mrb[0].mxu0
    %2777 = vmatprep.mubr.f32.mxu0 0.0
    %2778 = vmatmul.mubr.f32.gmra.mrb[0].mxu0 %v2696
    %v2779 = vpop.f32.mrb[0].mxu0
    %v2780 = vadd.f32 0.0, %v2779
    %v2781 = vpop.f32.mrb[0].mxu0
    %2782 = vdwg.mxu0
    %v2783 = vmul.f32 %v2765, %v2666
    %v2784 = vmul.f32 %v2770, %v2667
    %v2785 = vmul.f32 %v2775, %v2668
    %v2786 = vmul.f32 %v2780, %v2669
    %2791 = vrot.lane.b32.xlu0 %v2259, 64
    %v2792 = vpop.permute.xlu0 %2791
    %2793 = vrot.lane.b32.xlu0 %v2260, 64
    %v2794 = vpop.permute.xlu0 %2793
    %2795 = vrot.lane.b32.xlu0 %v2261, 64
    %v2796 = vpop.permute.xlu0 %2795
    %2797 = vrot.lane.b32.xlu0 %v2262, 64
    %v2798 = vpop.permute.xlu0 %2797
    %2807 = vrot.lane.b32.xlu0 %v2783, 64
    %v2808 = vpop.permute.xlu0 %2807
    %2809 = vrot.lane.b32.xlu0 %v2784, 64
    %v2810 = vpop.permute.xlu0 %2809
    %2811 = vrot.lane.b32.xlu0 %v2785, 64
    %v2812 = vpop.permute.xlu0 %2811
    %2813 = vrot.lane.b32.xlu0 %v2786, 64
    %v2814 = vpop.permute.xlu0 %2813
    %v2819 = vsel %vm641, %v1985, %v2792
    %v2820 = vsel %vm641, %v1986, %v2794
    %v2821 = vsel %vm641, %v1987, %v2796
    %v2822 = vsel %vm641, %v1988, %v2798
    %v2823 = vsel %vm641, %v2509, %v2808
    %v2824 = vsel %vm641, %v2510, %v2810
    %v2825 = vsel %vm641, %v2511, %v2812
    %v2826 = vsel %vm641, %v2512, %v2814
    %2827 = vst [vmem:[%s4 + $0x40] sm:$0xff] %v2819
    %2828 = vst [vmem:[%s4 + $0x48] sm:$0xff] %v2823
    %2829 = vst [vmem:[%s4 + $0x50] sm:$0xff] %v2820
    %2830 = vst [vmem:[%s4 + $0x58] sm:$0xff] %v2824
    %2831 = vst [vmem:[%s4 + $0x60] sm:$0xff] %v2821
    %2832 = vst [vmem:[%s4 + $0x68] sm:$0xff] %v2825
    %2833 = vst [vmem:[%s4 + $0x70] sm:$0xff] %v2822
    %2834 = vst [vmem:[%s4 + $0x78] sm:$0xff] %v2826
    // Predicated region
    $region30: #{repro_forward.1} parent=1 // pred_check
      _
    $region31: #{repro_forward.1} parent=1 // pred_check_branch
      %2836 = sbr.rel (0) target = $region33
    $region32: #{repro_forward.1} parent=1 // pred_region
      _
    $region33: #{repro_forward.1} parent=1 // pred_fallthru
      _
    // Predicated region
    $region34: #{repro_forward.1} parent=1 // pred_check
      _
    $region35: #{repro_forward.1} parent=1 // pred_check_branch
      %2838 = sbr.rel (0) target = $region37
    $region36: #{repro_forward.1} parent=1 // pred_region
      _
    $region37: #{repro_forward.1} parent=1 // pred_fallthru
      _
    %2839 = vsyncpa [#allocation3], 1
    %2840 = vsyncpa [#allocation5], 1

</llo_original>
